<compile_context>
chip_gen: v5e
topology: v5e:2x2
jax: 0.10.0
libtpu: 0.0.40
codegen_flags: <defaults>
</compile_context>

<pallas_src>
import math
import numpy as np
import jax
import jax.numpy as jnp
from jax.experimental import pallas as pl
from jax.experimental.pallas import tpu as pltpu

# ---------------- configuration (small shapes consistent with the module) ----
NBITS = 4
B, N, C = 2, 8, 32           # batch, seq-len, embed dim
H = 4                        # num_heads (dim % num_heads == 0)
HD = C // H                  # head_dim
HB = H * B                   # batched attention "batch" dim (head-major)
SCALE = HD ** -0.5
LN_EPS = 1e-5

# Activation quantizers (_ActQ): `signed` stays 0 in eval mode -> unsigned range.
QN_A, QP_A = 0, 2 ** NBITS - 1
# Weight quantizer in LinearQ_v2.forward is always signed.
QN_W, QP_W = -2 ** (NBITS - 1), 2 ** (NBITS - 1) - 1

# ---------------- scalar-table layout (shared by kernel and reference) -------
(S_INV_A_IN, S_ZP_IN, S_INV_A_Q, S_ZP_Q, S_INV_A_K, S_ZP_K,
 S_V_SCALE, S_ZP_V, S_QK_SCALE, S_INV_A_ATT, S_ZP_ATT,
 S_PIN_SCALE, S_ZP_PIN, S_A_PIN, S_NUM) = range(15)


# ------------- shared math (used inside the kernel and in the reference) -----
def _layernorm(x, gamma, beta):
    mu = jnp.mean(x, axis=-1, keepdims=True)
    var = jnp.mean((x - mu) ** 2, axis=-1, keepdims=True)
    return (x - mu) * jax.lax.rsqrt(var + LN_EPS) * gamma + beta


def _act_codes(x, inv_alpha, zp):
    # ActQ_v2 forward (eval): integer codes returned as floats (x/alpha folded
    # into a reciprocal multiply).
    return jnp.round(jnp.clip(x * inv_alpha + zp, QN_A, QP_A))


def _weight_quant(w, alpha_col):
    # LinearQ_v2 kernel-wise weight fake-quant; alpha_col shape (out, 1).
    return jnp.round(jnp.clip(w / alpha_col, QN_W, QP_W)) * alpha_col


# ----------------------------- fused Pallas kernel ----------------------------
def _fused_qattn_kernel(s_ref, x_ref, wqkv_ref, qb_ref, wproj_ref, pb_ref,
                        gq_ref, bq_ref, gk_ref, bk_ref, o_ref):
    # scalar quant constants from SMEM (no closure-baked floats -> no recompile
    # when scales change)
    inv_a_in = s_ref[S_INV_A_IN]
    zp_in = s_ref[S_ZP_IN]
    inv_a_q = s_ref[S_INV_A_Q]
    zp_q = s_ref[S_ZP_Q]
    inv_a_k = s_ref[S_INV_A_K]
    zp_k = s_ref[S_ZP_K]
    v_scale = s_ref[S_V_SCALE]
    zp_v = s_ref[S_ZP_V]
    qk_scale = s_ref[S_QK_SCALE]
    inv_a_att = s_ref[S_INV_A_ATT]
    zp_att = s_ref[S_ZP_ATT]
    pin_scale = s_ref[S_PIN_SCALE]
    zp_pin = s_ref[S_ZP_PIN]
    a_pin = s_ref[S_A_PIN]

    # ---- qkv quantized linear (weights pre-quantized + pre-transposed, bias-
    #      correction row precomputed in the wrapper) ----
    x2b = _act_codes(x_ref[...], inv_a_in, zp_in)                       # (M, C)
    qkv = jnp.dot(x2b, wqkv_ref[...],
                  preferred_element_type=jnp.float32) + qb_ref[...]     # (M, 3C)

    # ---- ONE head-batching relayout of the qkv slab -------------------------
    # column layout of qkv: [q | k | v], each C wide with head h at h*HD.
    # (M, 3C) -> (HB, N, HD) per tensor, batch index = h*B + b (head-major).
    # Only static slices / tile-boundary reshapes / concats: no compute, no
    # per-head masked ops inside the math below.
    def slab_to_heads(base):
        return jnp.concatenate(
            [qkv[:, base + h * HD: base + (h + 1) * HD].reshape(B, N, HD)
             for h in range(H)], axis=0)                                # (HB, N, HD)

    q0 = slab_to_heads(0)
    k0 = slab_to_heads(C)
    v0 = slab_to_heads(2 * C)

    # ---- attention core: every (batch, head) pair processed in ONE batched op
    gq = gq_ref[...]; bq = bq_ref[...]                                  # (1, HD)
    gk = gk_ref[...]; bk = bk_ref[...]

    q2 = _act_codes(_layernorm(q0, gq, bq), inv_a_q, zp_q)              # codes 0..15
    k2 = _act_codes(_layernorm(k0, gk, bk), inv_a_k, zp_k)
    v2 = _act_codes(v0, v_scale, zp_v)                                  # (v0*a_in)/a_v folded

    # 4-bit codes are exact in bf16; accumulate in f32 on the MXU.
    # "NT" dimension numbers (contract last dims) -> Mosaic handles the K
    # orientation natively, once for the whole batched slab.
    # TODO(synk): int8 operands on v5e/v6e (fp8 on v7x) for 2x MXU rate.
    s = jax.lax.dot_general(
        q2.astype(jnp.bfloat16), k2.astype(jnp.bfloat16),
        (((2,), (2,)), ((0,), (0,))),
        preferred_element_type=jnp.float32) * qk_scale                  # (HB, N, N)

    m = jnp.max(s, axis=-1, keepdims=True)
    e = jnp.exp(s - m)
    # approx=True would be cheaper but can flip 4-bit quant rounding boundaries
    # downstream; keep the exact reciprocal.
    attn = e * pl.reciprocal(jnp.sum(e, axis=-1, keepdims=True), approx=False)

    aqc = _act_codes(attn, inv_a_att, zp_att)                           # ActQ codes
    a2b = jnp.round(aqc - zp_att)                                       # == round(((aqc-zp)*a)/a)

    x1 = jax.lax.dot_general(
        a2b.astype(jnp.bfloat16), v2.astype(jnp.bfloat16),
        (((2,), (1,)), ((0,), (0,))),
        preferred_element_type=jnp.float32)                             # (HB, N, HD)

    # ---- back to a lane-dense (M, C) value (B, N, H, HD order) --------------
    # No VMEM scratch round trip: concatenate head outputs along lanes.
    x1_mc = jnp.concatenate(
        [x1[h * B:(h + 1) * B].reshape(B * N, HD) for h in range(H)],
        axis=-1)                                                        # (M, C)

    # ---- proj quantized linear ----
    x2b_p = _act_codes(x1_mc, pin_scale, zp_pin)                        # (M, C)
    o_ref[...] = (jnp.dot(x2b_p, wproj_ref[...],
                          preferred_element_type=jnp.float32) * a_pin
                  + pb_ref[...])
    # attn_drop / proj_drop have p=0 and the module is in eval -> identity.


# -------------------- constant folding done once in the wrapper ---------------
def derive_constants(P, S):
    """Weight fake-quant, qkv bias-correction and composite quant scalars.

    Everything here depends only on weights / quantizer state, never on x,
    so it is hoisted out of the kernel (weight-stationary inference)."""
    a_in, a_q, a_k = S["a_in"], S["a_q"], S["a_k"]
    a_v, a_att, a_pin = S["a_v"], S["a_att"], S["a_pin"]

    scal = np.zeros((S_NUM,), np.float32)
    scal[S_INV_A_IN] = 1.0 / a_in
    scal[S_ZP_IN] = S["zp_in"]
    scal[S_INV_A_Q] = 1.0 / a_q
    scal[S_ZP_Q] = S["zp_q"]
    scal[S_INV_A_K] = 1.0 / a_k
    scal[S_ZP_K] = S["zp_k"]
    scal[S_V_SCALE] = a_in / a_v                  # (v0*a_in)/a_v
    scal[S_ZP_V] = S["zp_v"]
    scal[S_QK_SCALE] = SCALE * a_q * a_k          # scale * a_q.mean * a_k.mean
    scal[S_INV_A_ATT] = 1.0 / a_att
    scal[S_ZP_ATT] = S["zp_att"]
    scal[S_PIN_SCALE] = (a_att * a_v) / a_pin     # (x1*a_att*a_v)/a_pin
    scal[S_ZP_PIN] = S["zp_pin"]
    scal[S_A_PIN] = a_pin

    wq_qkv = _weight_quant(P["qkv_w"], P["qkv_aw"])        # (3C, C)
    # qkv_bias = (-qkv(zp_raw*a_in*ones) + qkv.bias) / a_in   (rows identical)
    const_row = jnp.full((1, C), S["zp_in_raw"] * a_in, jnp.float32)
    qb = (P["qkv_b"] - const_row @ wq_qkv.T) * np.float32(1.0 / a_in)   # (1, 3C)
    wq_proj = _weight_quant(P["proj_w"], P["proj_aw"])     # (C, C)

    return dict(
        scalars=jnp.asarray(scal),
        wq_qkv_t=jnp.asarray(wq_qkv.T),   # (C, 3C) -> MXU-friendly (M,K)x(K,N)
        qb=qb,
        wq_proj_t=jnp.asarray(wq_proj.T),  # (C, C)
        proj_b=P["proj_b"],
        gq=P["gq"], bq=P["bq"], gk=P["gk"], bk=P["bk"],
    )


# ----------------------------- wrapper ----------------------------------------
def q_attention_forward(x0, consts):
    Bx, Nx, Cx = x0.shape
    M = Bx * Nx
    O3 = 3 * Cx
    x2d = x0.reshape(M, Cx)

    out2d = pl.pallas_call(
        _fused_qattn_kernel,
        out_shape=jax.ShapeDtypeStruct((M, Cx), jnp.float32),
        grid=(1,),
        in_specs=[
            pl.BlockSpec(memory_space=pltpu.MemorySpace.SMEM),   # quant scalars
            pl.BlockSpec((M, Cx), lambda i: (0, 0)),             # x
            pl.BlockSpec((Cx, O3), lambda i: (0, 0)),            # wq_qkv_t
            pl.BlockSpec((1, O3), lambda i: (0, 0)),             # qb
            pl.BlockSpec((Cx, Cx), lambda i: (0, 0)),            # wq_proj_t
            pl.BlockSpec((1, Cx), lambda i: (0, 0)),             # proj_b
            pl.BlockSpec((1, HD), lambda i: (0, 0)),             # gq
            pl.BlockSpec((1, HD), lambda i: (0, 0)),             # bq
            pl.BlockSpec((1, HD), lambda i: (0, 0)),             # gk
            pl.BlockSpec((1, HD), lambda i: (0, 0)),             # bk
        ],
        out_specs=pl.BlockSpec((M, Cx), lambda i: (0, 0)),
        compiler_params=pltpu.CompilerParams(
            dimension_semantics=("arbitrary",)),
    )(consts["scalars"], x2d, consts["wq_qkv_t"], consts["qb"],
      consts["wq_proj_t"], consts["proj_b"],
      consts["gq"], consts["bq"], consts["gk"], consts["bk"])

    return out2d.reshape(Bx, Nx, Cx)


# ----------------------------- pure-jnp reference ------------------------------
def reference_forward(x0, consts):
    Bx, Nx, Cx = x0.shape
    sv = consts["scalars"]
    x2d = x0.reshape(Bx * Nx, Cx)
    x2b = _act_codes(x2d, sv[S_INV_A_IN], sv[S_ZP_IN])
    qkv = x2b @ consts["wq_qkv_t"] + consts["qb"]
    qkv5 = qkv.reshape(Bx, Nx, 3, H, HD).transpose(2, 0, 3, 1, 4)
    q0, k0, v0 = qkv5[0], qkv5[1], qkv5[2]
    q1 = _layernorm(q0, consts["gq"], consts["bq"])
    k1 = _layernorm(k0, consts["gk"], consts["bk"])
    q2 = _act_codes(q1, sv[S_INV_A_Q], sv[S_ZP_Q])
    k2 = _act_codes(k1, sv[S_INV_A_K], sv[S_ZP_K])
    v2 = _act_codes(v0, sv[S_V_SCALE], sv[S_ZP_V])
    s = jnp.einsum("bhnd,bhmd->bhnm", q2, k2) * sv[S_QK_SCALE]
    m = jnp.max(s, axis=-1, keepdims=True)
    e = jnp.exp(s - m)
    attn = e * (1.0 / jnp.sum(e, axis=-1, keepdims=True))
    aqc = _act_codes(attn, sv[S_INV_A_ATT], sv[S_ZP_ATT])
    a2b = jnp.round(aqc - sv[S_ZP_ATT])
    x1 = jnp.einsum("bhnm,bhmd->bhnd", a2b, v2)
    x1 = x1.transpose(0, 2, 1, 3).reshape(Bx * Nx, Cx)
    x2bp = _act_codes(x1, sv[S_PIN_SCALE], sv[S_ZP_PIN])
    out = (x2bp @ consts["wq_proj_t"]) * sv[S_A_PIN] + consts["proj_b"]
    return out.reshape(Bx, Nx, Cx)


if __name__ == "__main__":
    rng = np.random.default_rng(0)

    # ----- deterministic synthetic parameters (shapes follow __init__) -----
    # qkv built with bias so the "+ self.qkv.bias" term in forward is defined.
    qkv_w = rng.normal(0.0, 0.05, size=(3 * C, C)).astype(np.float32)
    qkv_b = rng.normal(0.0, 0.02, size=(3 * C,)).astype(np.float32)
    proj_w = rng.normal(0.0, 0.05, size=(C, C)).astype(np.float32)
    proj_b = rng.normal(0.0, 0.02, size=(C,)).astype(np.float32)
    # kernel-wise LSQ weight scales (same formula as the training-time init)
    qkv_aw = (2.0 * np.abs(qkv_w).mean(axis=1, keepdims=True) / math.sqrt(QP_W)).astype(np.float32)
    proj_aw = (2.0 * np.abs(proj_w).mean(axis=1, keepdims=True) / math.sqrt(QP_W)).astype(np.float32)
    # LayerNorm(head_dim) params, PyTorch default init (weight=1, bias=0)
    gq = np.ones((1, HD), np.float32); bq = np.zeros((1, HD), np.float32)
    gk = np.ones((1, HD), np.float32); bk = np.zeros((1, HD), np.float32)
    # activation quantizer (alpha, zero_point) per "kernel" dim
    qkv_act_alpha = (0.30 + 0.02 * np.linspace(0.0, 1.0, C)).astype(np.float32)   # (C,)
    qkv_act_zp = (7.30 + 0.10 * np.linspace(0.0, 1.0, C)).astype(np.float32)      # (C,)
    q_act_alpha = np.full(H, 0.30, np.float32); q_act_zp = np.full(H, 7.40, np.float32)
    k_act_alpha = np.full(H, 0.32, np.float32); k_act_zp = np.full(H, 7.60, np.float32)
    v_act_alpha = np.full(H, 0.10, np.float32); v_act_zp = np.full(H, 7.20, np.float32)
    attn_act_alpha = np.full(H, 1.0 / 15.0, np.float32); attn_act_zp = np.full(H, 0.60, np.float32)
    proj_act_alpha = np.full(C, 0.10, np.float32); proj_act_zp = np.full(C, 5.20, np.float32)

    # scalar means exactly as used in forward (.mean() of alpha / rounded zp)
    S = dict(
        a_in=float(qkv_act_alpha.mean()),
        zp_in_raw=float(qkv_act_zp.mean()),
        zp_in=float(np.round(qkv_act_zp).mean()),
        a_q=float(q_act_alpha.mean()), zp_q=float(np.round(q_act_zp).mean()),
        a_k=float(k_act_alpha.mean()), zp_k=float(np.round(k_act_zp).mean()),
        a_v=float(v_act_alpha.mean()), zp_v=float(np.round(v_act_zp).mean()),
        a_att=float(attn_act_alpha.mean()), zp_att=float(np.round(attn_act_zp).mean()),
        a_pin=float(proj_act_alpha.mean()), zp_pin=float(np.round(proj_act_zp).mean()),
    )
    P = dict(
        qkv_w=jnp.asarray(qkv_w), qkv_aw=jnp.asarray(qkv_aw),
        qkv_b=jnp.asarray(qkv_b.reshape(1, -1)),
        proj_w=jnp.asarray(proj_w), proj_aw=jnp.asarray(proj_aw),
        proj_b=jnp.asarray(proj_b.reshape(1, -1)),
        gq=jnp.asarray(gq), bq=jnp.asarray(bq),
        gk=jnp.asarray(gk), bk=jnp.asarray(bk),
    )

    consts = derive_constants(P, S)

    x0 = jax.random.normal(jax.random.PRNGKey(0), (B, N, C), dtype=jnp.float32)

    out = jax.block_until_ready(q_attention_forward(x0, consts))
    ref = jax.block_until_ready(reference_forward(x0, consts))

    assert np.all(np.isfinite(np.asarray(out)))
    np.testing.assert_allclose(np.asarray(out), np.asarray(ref), rtol=2e-3, atol=2e-3)
    print("KERNEL_OK")
</pallas_src>

<mosaic_0001>
module attributes {stable_mosaic.version = 11 : i64} {
  func.func @_fused_qattn_kernel(%arg0: i32, %arg1: memref<14xf32, #tpu.memory_space<smem>>, %arg2: memref<16x32xf32, #tpu.memory_space<vmem>>, %arg3: memref<32x96xf32, #tpu.memory_space<vmem>>, %arg4: memref<1x96xf32, #tpu.memory_space<vmem>>, %arg5: memref<32x32xf32, #tpu.memory_space<vmem>>, %arg6: memref<1x32xf32, #tpu.memory_space<vmem>>, %arg7: memref<1x8xf32, #tpu.memory_space<vmem>>, %arg8: memref<1x8xf32, #tpu.memory_space<vmem>>, %arg9: memref<1x8xf32, #tpu.memory_space<vmem>>, %arg10: memref<1x8xf32, #tpu.memory_space<vmem>>, %arg11: memref<16x32xf32, #tpu.memory_space<vmem>>) attributes {dimension_semantics = [#tpu.dimension_semantics<arbitrary>], iteration_bounds = array<i64: 1>, scalar_prefetch = 0 : i64, scratch_operands = 0 : i64, tpu.core_type = #tpu.core_type<tc>, window_params = [{transform_indices = @transform_0, window_bounds = array<i64: 14>}, {pipeline_mode = #tpu.pipeline_mode<synchronous>, transform_indices = @transform_1, window_bounds = array<i64: 16, 32>}, {pipeline_mode = #tpu.pipeline_mode<synchronous>, transform_indices = @transform_2, window_bounds = array<i64: 32, 96>}, {pipeline_mode = #tpu.pipeline_mode<synchronous>, transform_indices = @transform_3, window_bounds = array<i64: 1, 96>}, {pipeline_mode = #tpu.pipeline_mode<synchronous>, transform_indices = @transform_4, window_bounds = array<i64: 32, 32>}, {pipeline_mode = #tpu.pipeline_mode<synchronous>, transform_indices = @transform_5, window_bounds = array<i64: 1, 32>}, {pipeline_mode = #tpu.pipeline_mode<synchronous>, transform_indices = @transform_6, window_bounds = array<i64: 1, 8>}, {pipeline_mode = #tpu.pipeline_mode<synchronous>, transform_indices = @transform_7, window_bounds = array<i64: 1, 8>}, {pipeline_mode = #tpu.pipeline_mode<synchronous>, transform_indices = @transform_8, window_bounds = array<i64: 1, 8>}, {pipeline_mode = #tpu.pipeline_mode<synchronous>, transform_indices = @transform_9, window_bounds = array<i64: 1, 8>}, {pipeline_mode = #tpu.pipeline_mode<synchronous>, transform_indices = @transform_10, window_bounds = array<i64: 16, 32>}]} {
    %c0 = arith.constant 0 : index
    %0 = memref.load %arg1[%c0] : memref<14xf32, #tpu.memory_space<smem>>
    %c1 = arith.constant 1 : index
    %1 = memref.load %arg1[%c1] : memref<14xf32, #tpu.memory_space<smem>>
    %c2 = arith.constant 2 : index
    %2 = memref.load %arg1[%c2] : memref<14xf32, #tpu.memory_space<smem>>
    %c3 = arith.constant 3 : index
    %3 = memref.load %arg1[%c3] : memref<14xf32, #tpu.memory_space<smem>>
    %c4 = arith.constant 4 : index
    %4 = memref.load %arg1[%c4] : memref<14xf32, #tpu.memory_space<smem>>
    %c5 = arith.constant 5 : index
    %5 = memref.load %arg1[%c5] : memref<14xf32, #tpu.memory_space<smem>>
    %c6 = arith.constant 6 : index
    %6 = memref.load %arg1[%c6] : memref<14xf32, #tpu.memory_space<smem>>
    %c7 = arith.constant 7 : index
    %7 = memref.load %arg1[%c7] : memref<14xf32, #tpu.memory_space<smem>>
    %c8 = arith.constant 8 : index
    %8 = memref.load %arg1[%c8] : memref<14xf32, #tpu.memory_space<smem>>
    %c9 = arith.constant 9 : index
    %9 = memref.load %arg1[%c9] : memref<14xf32, #tpu.memory_space<smem>>
    %c10 = arith.constant 10 : index
    %10 = memref.load %arg1[%c10] : memref<14xf32, #tpu.memory_space<smem>>
    %c11 = arith.constant 11 : index
    %11 = memref.load %arg1[%c11] : memref<14xf32, #tpu.memory_space<smem>>
    %c12 = arith.constant 12 : index
    %12 = memref.load %arg1[%c12] : memref<14xf32, #tpu.memory_space<smem>>
    %c13 = arith.constant 13 : index
    %13 = memref.load %arg1[%c13] : memref<14xf32, #tpu.memory_space<smem>>
    %c0_0 = arith.constant 0 : index
    %c0_1 = arith.constant 0 : index
    %14 = vector.load %arg2[%c0_0, %c0_1] : memref<16x32xf32, #tpu.memory_space<vmem>>, vector<16x32xf32>
    %15 = vector.broadcast %0 : f32 to vector<16x32xf32>
    %16 = arith.mulf %14, %15 : vector<16x32xf32>
    %17 = vector.broadcast %1 : f32 to vector<16x32xf32>
    %18 = arith.addf %16, %17 : vector<16x32xf32>
    %c0_i32 = arith.constant 0 : i32
    %c15_i32 = arith.constant 15 : i32
    %19 = arith.sitofp %c0_i32 : i32 to f32
    %20 = vector.broadcast %19 : f32 to vector<16x32xf32>
    %21 = arith.maximumf %20, %18 : vector<16x32xf32>
    %22 = arith.sitofp %c15_i32 : i32 to f32
    %23 = vector.broadcast %22 : f32 to vector<16x32xf32>
    %24 = arith.minimumf %23, %21 : vector<16x32xf32>
    %25 = math.roundeven %24 : vector<16x32xf32>
    %c0_2 = arith.constant 0 : index
    %c0_3 = arith.constant 0 : index
    %26 = vector.load %arg3[%c0_2, %c0_3] : memref<32x96xf32, #tpu.memory_space<vmem>>, vector<32x96xf32>
    %cst = arith.constant dense<0.000000e+00> : vector<16x96xf32>
    %27 = tpu.matmul %25, %26, %cst {dimension_numbers = #tpu.dot_dimension_numbers<[1], [0], [0], [1], [0, 0, 1, 1], [], []>} : vector<16x32xf32>, vector<32x96xf32>, vector<16x96xf32> -> vector<16x96xf32>
    %c0_4 = arith.constant 0 : index
    %c0_5 = arith.constant 0 : index
    %28 = vector.load %arg4[%c0_4, %c0_5] : memref<1x96xf32, #tpu.memory_space<vmem>>, vector<1x96xf32>
    %29 = vector.broadcast %28 : vector<1x96xf32> to vector<16x96xf32>
    %30 = arith.addf %27, %29 : vector<16x96xf32>
    %31 = vector.extract_strided_slice %30 {offsets = [0, 0], sizes = [16, 8], strides = [1, 1]} : vector<16x96xf32> to vector<16x8xf32>
    %32 = vector.shape_cast %31 : vector<16x8xf32> to vector<2x8x8xf32>
    %33 = vector.extract_strided_slice %30 {offsets = [0, 8], sizes = [16, 8], strides = [1, 1]} : vector<16x96xf32> to vector<16x8xf32>
    %34 = vector.shape_cast %33 : vector<16x8xf32> to vector<2x8x8xf32>
    %35 = vector.extract_strided_slice %30 {offsets = [0, 16], sizes = [16, 8], strides = [1, 1]} : vector<16x96xf32> to vector<16x8xf32>
    %36 = vector.shape_cast %35 : vector<16x8xf32> to vector<2x8x8xf32>
    %37 = vector.extract_strided_slice %30 {offsets = [0, 24], sizes = [16, 8], strides = [1, 1]} : vector<16x96xf32> to vector<16x8xf32>
    %38 = vector.shape_cast %37 : vector<16x8xf32> to vector<2x8x8xf32>
    %39 = tpu.concatenate %32, %34, %36, %38 in 0 : vector<2x8x8xf32>, vector<2x8x8xf32>, vector<2x8x8xf32>, vector<2x8x8xf32> -> vector<8x8x8xf32>
    %40 = vector.extract_strided_slice %30 {offsets = [0, 32], sizes = [16, 8], strides = [1, 1]} : vector<16x96xf32> to vector<16x8xf32>
    %41 = vector.shape_cast %40 : vector<16x8xf32> to vector<2x8x8xf32>
    %42 = vector.extract_strided_slice %30 {offsets = [0, 40], sizes = [16, 8], strides = [1, 1]} : vector<16x96xf32> to vector<16x8xf32>
    %43 = vector.shape_cast %42 : vector<16x8xf32> to vector<2x8x8xf32>
    %44 = vector.extract_strided_slice %30 {offsets = [0, 48], sizes = [16, 8], strides = [1, 1]} : vector<16x96xf32> to vector<16x8xf32>
    %45 = vector.shape_cast %44 : vector<16x8xf32> to vector<2x8x8xf32>
    %46 = vector.extract_strided_slice %30 {offsets = [0, 56], sizes = [16, 8], strides = [1, 1]} : vector<16x96xf32> to vector<16x8xf32>
    %47 = vector.shape_cast %46 : vector<16x8xf32> to vector<2x8x8xf32>
    %48 = tpu.concatenate %41, %43, %45, %47 in 0 : vector<2x8x8xf32>, vector<2x8x8xf32>, vector<2x8x8xf32>, vector<2x8x8xf32> -> vector<8x8x8xf32>
    %49 = vector.extract_strided_slice %30 {offsets = [0, 64], sizes = [16, 8], strides = [1, 1]} : vector<16x96xf32> to vector<16x8xf32>
    %50 = vector.shape_cast %49 : vector<16x8xf32> to vector<2x8x8xf32>
    %51 = vector.extract_strided_slice %30 {offsets = [0, 72], sizes = [16, 8], strides = [1, 1]} : vector<16x96xf32> to vector<16x8xf32>
    %52 = vector.shape_cast %51 : vector<16x8xf32> to vector<2x8x8xf32>
    %53 = vector.extract_strided_slice %30 {offsets = [0, 80], sizes = [16, 8], strides = [1, 1]} : vector<16x96xf32> to vector<16x8xf32>
    %54 = vector.shape_cast %53 : vector<16x8xf32> to vector<2x8x8xf32>
    %55 = vector.extract_strided_slice %30 {offsets = [0, 88], sizes = [16, 8], strides = [1, 1]} : vector<16x96xf32> to vector<16x8xf32>
    %56 = vector.shape_cast %55 : vector<16x8xf32> to vector<2x8x8xf32>
    %57 = tpu.concatenate %50, %52, %54, %56 in 0 : vector<2x8x8xf32>, vector<2x8x8xf32>, vector<2x8x8xf32>, vector<2x8x8xf32> -> vector<8x8x8xf32>
    %c0_6 = arith.constant 0 : index
    %c0_7 = arith.constant 0 : index
    %58 = vector.load %arg7[%c0_6, %c0_7] : memref<1x8xf32, #tpu.memory_space<vmem>>, vector<1x8xf32>
    %c0_8 = arith.constant 0 : index
    %c0_9 = arith.constant 0 : index
    %59 = vector.load %arg8[%c0_8, %c0_9] : memref<1x8xf32, #tpu.memory_space<vmem>>, vector<1x8xf32>
    %c0_10 = arith.constant 0 : index
    %c0_11 = arith.constant 0 : index
    %60 = vector.load %arg9[%c0_10, %c0_11] : memref<1x8xf32, #tpu.memory_space<vmem>>, vector<1x8xf32>
    %c0_12 = arith.constant 0 : index
    %c0_13 = arith.constant 0 : index
    %61 = vector.load %arg10[%c0_12, %c0_13] : memref<1x8xf32, #tpu.memory_space<vmem>>, vector<1x8xf32>
    %cst_14 = arith.constant dense<0.000000e+00> : vector<8x8xf32>
    %62 = vector.multi_reduction <add>, %39, %cst_14 [2] : vector<8x8x8xf32> to vector<8x8xf32>
    %63 = vector.shape_cast %62 : vector<8x8xf32> to vector<8x8x1xf32>
    %cst_15 = arith.constant 8.000000e+00 : f32
    %64 = vector.broadcast %cst_15 : f32 to vector<8x8x1xf32>
    %65 = arith.divf %63, %64 : vector<8x8x1xf32>
    %66 = vector.broadcast %65 : vector<8x8x1xf32> to vector<8x8x8xf32>
    %67 = arith.subf %39, %66 : vector<8x8x8xf32>
    %68 = arith.mulf %67, %67 : vector<8x8x8xf32>
    %cst_16 = arith.constant dense<0.000000e+00> : vector<8x8xf32>
    %69 = vector.multi_reduction <add>, %68, %cst_16 [2] : vector<8x8x8xf32> to vector<8x8xf32>
    %70 = vector.shape_cast %69 : vector<8x8xf32> to vector<8x8x1xf32>
    %cst_17 = arith.constant 8.000000e+00 : f32
    %71 = vector.broadcast %cst_17 : f32 to vector<8x8x1xf32>
    %72 = arith.divf %70, %71 : vector<8x8x1xf32>
    %73 = vector.broadcast %65 : vector<8x8x1xf32> to vector<8x8x8xf32>
    %74 = arith.subf %39, %73 : vector<8x8x8xf32>
    %cst_18 = arith.constant 9.99999974E-6 : f32
    %75 = vector.broadcast %cst_18 : f32 to vector<8x8x1xf32>
    %76 = arith.addf %72, %75 : vector<8x8x1xf32>
    %77 = math.rsqrt %76 : vector<8x8x1xf32>
    %78 = vector.broadcast %77 : vector<8x8x1xf32> to vector<8x8x8xf32>
    %79 = arith.mulf %74, %78 : vector<8x8x8xf32>
    %80 = vector.shape_cast %58 : vector<1x8xf32> to vector<1x1x8xf32>
    %81 = vector.broadcast %80 : vector<1x1x8xf32> to vector<8x8x8xf32>
    %82 = arith.mulf %79, %81 : vector<8x8x8xf32>
    %83 = vector.shape_cast %59 : vector<1x8xf32> to vector<1x1x8xf32>
    %84 = vector.broadcast %83 : vector<1x1x8xf32> to vector<8x8x8xf32>
    %85 = arith.addf %82, %84 : vector<8x8x8xf32>
    %86 = vector.broadcast %2 : f32 to vector<8x8x8xf32>
    %87 = arith.mulf %85, %86 : vector<8x8x8xf32>
    %88 = vector.broadcast %3 : f32 to vector<8x8x8xf32>
    %89 = arith.addf %87, %88 : vector<8x8x8xf32>
    %c0_i32_19 = arith.constant 0 : i32
    %c15_i32_20 = arith.constant 15 : i32
    %90 = arith.sitofp %c0_i32_19 : i32 to f32
    %91 = vector.broadcast %90 : f32 to vector<8x8x8xf32>
    %92 = arith.maximumf %91, %89 : vector<8x8x8xf32>
    %93 = arith.sitofp %c15_i32_20 : i32 to f32
    %94 = vector.broadcast %93 : f32 to vector<8x8x8xf32>
    %95 = arith.minimumf %94, %92 : vector<8x8x8xf32>
    %96 = math.roundeven %95 : vector<8x8x8xf32>
    %cst_21 = arith.constant dense<0.000000e+00> : vector<8x8xf32>
    %97 = vector.multi_reduction <add>, %48, %cst_21 [2] : vector<8x8x8xf32> to vector<8x8xf32>
    %98 = vector.shape_cast %97 : vector<8x8xf32> to vector<8x8x1xf32>
    %cst_22 = arith.constant 8.000000e+00 : f32
    %99 = vector.broadcast %cst_22 : f32 to vector<8x8x1xf32>
    %100 = arith.divf %98, %99 : vector<8x8x1xf32>
    %101 = vector.broadcast %100 : vector<8x8x1xf32> to vector<8x8x8xf32>
    %102 = arith.subf %48, %101 : vector<8x8x8xf32>
    %103 = arith.mulf %102, %102 : vector<8x8x8xf32>
    %cst_23 = arith.constant dense<0.000000e+00> : vector<8x8xf32>
    %104 = vector.multi_reduction <add>, %103, %cst_23 [2] : vector<8x8x8xf32> to vector<8x8xf32>
    %105 = vector.shape_cast %104 : vector<8x8xf32> to vector<8x8x1xf32>
    %cst_24 = arith.constant 8.000000e+00 : f32
    %106 = vector.broadcast %cst_24 : f32 to vector<8x8x1xf32>
    %107 = arith.divf %105, %106 : vector<8x8x1xf32>
    %108 = vector.broadcast %100 : vector<8x8x1xf32> to vector<8x8x8xf32>
    %109 = arith.subf %48, %108 : vector<8x8x8xf32>
    %cst_25 = arith.constant 9.99999974E-6 : f32
    %110 = vector.broadcast %cst_25 : f32 to vector<8x8x1xf32>
    %111 = arith.addf %107, %110 : vector<8x8x1xf32>
    %112 = math.rsqrt %111 : vector<8x8x1xf32>
    %113 = vector.broadcast %112 : vector<8x8x1xf32> to vector<8x8x8xf32>
    %114 = arith.mulf %109, %113 : vector<8x8x8xf32>
    %115 = vector.shape_cast %60 : vector<1x8xf32> to vector<1x1x8xf32>
    %116 = vector.broadcast %115 : vector<1x1x8xf32> to vector<8x8x8xf32>
    %117 = arith.mulf %114, %116 : vector<8x8x8xf32>
    %118 = vector.shape_cast %61 : vector<1x8xf32> to vector<1x1x8xf32>
    %119 = vector.broadcast %118 : vector<1x1x8xf32> to vector<8x8x8xf32>
    %120 = arith.addf %117, %119 : vector<8x8x8xf32>
    %121 = vector.broadcast %4 : f32 to vector<8x8x8xf32>
    %122 = arith.mulf %120, %121 : vector<8x8x8xf32>
    %123 = vector.broadcast %5 : f32 to vector<8x8x8xf32>
    %124 = arith.addf %122, %123 : vector<8x8x8xf32>
    %c0_i32_26 = arith.constant 0 : i32
    %c15_i32_27 = arith.constant 15 : i32
    %125 = arith.sitofp %c0_i32_26 : i32 to f32
    %126 = vector.broadcast %125 : f32 to vector<8x8x8xf32>
    %127 = arith.maximumf %126, %124 : vector<8x8x8xf32>
    %128 = arith.sitofp %c15_i32_27 : i32 to f32
    %129 = vector.broadcast %128 : f32 to vector<8x8x8xf32>
    %130 = arith.minimumf %129, %127 : vector<8x8x8xf32>
    %131 = math.roundeven %130 : vector<8x8x8xf32>
    %132 = vector.broadcast %6 : f32 to vector<8x8x8xf32>
    %133 = arith.mulf %57, %132 : vector<8x8x8xf32>
    %134 = vector.broadcast %7 : f32 to vector<8x8x8xf32>
    %135 = arith.addf %133, %134 : vector<8x8x8xf32>
    %c0_i32_28 = arith.constant 0 : i32
    %c15_i32_29 = arith.constant 15 : i32
    %136 = arith.sitofp %c0_i32_28 : i32 to f32
    %137 = vector.broadcast %136 : f32 to vector<8x8x8xf32>
    %138 = arith.maximumf %137, %135 : vector<8x8x8xf32>
    %139 = arith.sitofp %c15_i32_29 : i32 to f32
    %140 = vector.broadcast %139 : f32 to vector<8x8x8xf32>
    %141 = arith.minimumf %140, %138 : vector<8x8x8xf32>
    %142 = math.roundeven %141 : vector<8x8x8xf32>
    %143 = arith.truncf %96 : vector<8x8x8xf32> to vector<8x8x8xbf16>
    %144 = arith.truncf %131 : vector<8x8x8xf32> to vector<8x8x8xbf16>
    %cst_30 = arith.constant dense<0.000000e+00> : vector<8x8x8xf32>
    %145 = tpu.matmul %143, %144, %cst_30 {dimension_numbers = #tpu.dot_dimension_numbers<[2], [2], [1], [1], [0, 0, 0, 1, 1, 1], [0], [0]>} : vector<8x8x8xbf16>, vector<8x8x8xbf16>, vector<8x8x8xf32> -> vector<8x8x8xf32>
    %146 = vector.broadcast %8 : f32 to vector<8x8x8xf32>
    %147 = arith.mulf %145, %146 : vector<8x8x8xf32>
    %cst_31 = arith.constant dense<0xFF800000> : vector<8x8xf32>
    %148 = vector.multi_reduction <maximumf>, %147, %cst_31 [2] : vector<8x8x8xf32> to vector<8x8xf32>
    %149 = vector.shape_cast %148 : vector<8x8xf32> to vector<8x8x1xf32>
    %150 = vector.broadcast %149 : vector<8x8x1xf32> to vector<8x8x8xf32>
    %151 = arith.subf %147, %150 : vector<8x8x8xf32>
    %152 = math.exp %151 : vector<8x8x8xf32>
    %cst_32 = arith.constant dense<0.000000e+00> : vector<8x8xf32>
    %153 = vector.multi_reduction <add>, %152, %cst_32 [2] : vector<8x8x8xf32> to vector<8x8xf32>
    %154 = vector.shape_cast %153 : vector<8x8xf32> to vector<8x8x1xf32>
    %155 = tpu.reciprocal %154 : vector<8x8x1xf32> -> vector<8x8x1xf32>
    %156 = vector.broadcast %155 : vector<8x8x1xf32> to vector<8x8x8xf32>
    %157 = arith.mulf %152, %156 : vector<8x8x8xf32>
    %158 = vector.broadcast %9 : f32 to vector<8x8x8xf32>
    %159 = arith.mulf %157, %158 : vector<8x8x8xf32>
    %160 = vector.broadcast %10 : f32 to vector<8x8x8xf32>
    %161 = arith.addf %159, %160 : vector<8x8x8xf32>
    %c0_i32_33 = arith.constant 0 : i32
    %c15_i32_34 = arith.constant 15 : i32
    %162 = arith.sitofp %c0_i32_33 : i32 to f32
    %163 = vector.broadcast %162 : f32 to vector<8x8x8xf32>
    %164 = arith.maximumf %163, %161 : vector<8x8x8xf32>
    %165 = arith.sitofp %c15_i32_34 : i32 to f32
    %166 = vector.broadcast %165 : f32 to vector<8x8x8xf32>
    %167 = arith.minimumf %166, %164 : vector<8x8x8xf32>
    %168 = math.roundeven %167 : vector<8x8x8xf32>
    %169 = vector.broadcast %10 : f32 to vector<8x8x8xf32>
    %170 = arith.subf %168, %169 : vector<8x8x8xf32>
    %171 = math.roundeven %170 : vector<8x8x8xf32>
    %172 = arith.truncf %171 : vector<8x8x8xf32> to vector<8x8x8xbf16>
    %173 = arith.truncf %142 : vector<8x8x8xf32> to vector<8x8x8xbf16>
    %cst_35 = arith.constant dense<0.000000e+00> : vector<8x8x8xf32>
    %174 = tpu.matmul %172, %173, %cst_35 {dimension_numbers = #tpu.dot_dimension_numbers<[2], [1], [1], [2], [0, 0, 0, 1, 1, 2], [0], [0]>} : vector<8x8x8xbf16>, vector<8x8x8xbf16>, vector<8x8x8xf32> -> vector<8x8x8xf32>
    %175 = vector.extract_strided_slice %174 {offsets = [0, 0, 0], sizes = [2, 8, 8], strides = [1, 1, 1]} : vector<8x8x8xf32> to vector<2x8x8xf32>
    %176 = vector.shape_cast %175 : vector<2x8x8xf32> to vector<16x8xf32>
    %177 = vector.extract_strided_slice %174 {offsets = [2, 0, 0], sizes = [2, 8, 8], strides = [1, 1, 1]} : vector<8x8x8xf32> to vector<2x8x8xf32>
    %178 = vector.shape_cast %177 : vector<2x8x8xf32> to vector<16x8xf32>
    %179 = vector.extract_strided_slice %174 {offsets = [4, 0, 0], sizes = [2, 8, 8], strides = [1, 1, 1]} : vector<8x8x8xf32> to vector<2x8x8xf32>
    %180 = vector.shape_cast %179 : vector<2x8x8xf32> to vector<16x8xf32>
    %181 = vector.extract_strided_slice %174 {offsets = [6, 0, 0], sizes = [2, 8, 8], strides = [1, 1, 1]} : vector<8x8x8xf32> to vector<2x8x8xf32>
    %182 = vector.shape_cast %181 : vector<2x8x8xf32> to vector<16x8xf32>
    %183 = tpu.concatenate %176, %178, %180, %182 in 1 : vector<16x8xf32>, vector<16x8xf32>, vector<16x8xf32>, vector<16x8xf32> -> vector<16x32xf32>
    %184 = vector.broadcast %11 : f32 to vector<16x32xf32>
    %185 = arith.mulf %183, %184 : vector<16x32xf32>
    %186 = vector.broadcast %12 : f32 to vector<16x32xf32>
    %187 = arith.addf %185, %186 : vector<16x32xf32>
    %c0_i32_36 = arith.constant 0 : i32
    %c15_i32_37 = arith.constant 15 : i32
    %188 = arith.sitofp %c0_i32_36 : i32 to f32
    %189 = vector.broadcast %188 : f32 to vector<16x32xf32>
    %190 = arith.maximumf %189, %187 : vector<16x32xf32>
    %191 = arith.sitofp %c15_i32_37 : i32 to f32
    %192 = vector.broadcast %191 : f32 to vector<16x32xf32>
    %193 = arith.minimumf %192, %190 : vector<16x32xf32>
    %194 = math.roundeven %193 : vector<16x32xf32>
    %c0_38 = arith.constant 0 : index
    %c0_39 = arith.constant 0 : index
    %195 = vector.load %arg5[%c0_38, %c0_39] : memref<32x32xf32, #tpu.memory_space<vmem>>, vector<32x32xf32>
    %cst_40 = arith.constant dense<0.000000e+00> : vector<16x32xf32>
    %196 = tpu.matmul %194, %195, %cst_40 {dimension_numbers = #tpu.dot_dimension_numbers<[1], [0], [0], [1], [0, 0, 1, 1], [], []>} : vector<16x32xf32>, vector<32x32xf32>, vector<16x32xf32> -> vector<16x32xf32>
    %197 = vector.broadcast %13 : f32 to vector<16x32xf32>
    %198 = arith.mulf %196, %197 : vector<16x32xf32>
    %c0_41 = arith.constant 0 : index
    %c0_42 = arith.constant 0 : index
    %199 = vector.load %arg6[%c0_41, %c0_42] : memref<1x32xf32, #tpu.memory_space<vmem>>, vector<1x32xf32>
    %200 = vector.broadcast %199 : vector<1x32xf32> to vector<16x32xf32>
    %201 = arith.addf %198, %200 : vector<16x32xf32>
    %c0_43 = arith.constant 0 : index
    %c0_44 = arith.constant 0 : index
    %202 = vector.load %arg11[%c0_43, %c0_44] : memref<16x32xf32, #tpu.memory_space<vmem>>, vector<16x32xf32>
    tpu.vector_store %arg11[%c0_43, %c0_44], %201 {strides = array<i32>} : memref<16x32xf32, #tpu.memory_space<vmem>>, vector<16x32xf32>,
    return
  }
  func.func @transform_0(%arg0: i32) -> i32 {
    %c0_i32 = arith.constant 0 : i32
    %c0_i32_0 = arith.constant 0 : i32
    return %c0_i32 : i32
  }
  func.func @transform_1(%arg0: i32) -> (i32, i32) {
    %c0_i32 = arith.constant 0 : i32
    %c0_i32_0 = arith.constant 0 : i32
    %c0_i32_1 = arith.constant 0 : i32
    return %c0_i32, %c0_i32_0 : i32, i32
  }
  func.func @transform_2(%arg0: i32) -> (i32, i32) {
    %c0_i32 = arith.constant 0 : i32
    %c0_i32_0 = arith.constant 0 : i32
    %c0_i32_1 = arith.constant 0 : i32
    return %c0_i32, %c0_i32_0 : i32, i32
  }
  func.func @transform_3(%arg0: i32) -> (i32, i32) {
    %c0_i32 = arith.constant 0 : i32
    %c0_i32_0 = arith.constant 0 : i32
    %c0_i32_1 = arith.constant 0 : i32
    return %c0_i32, %c0_i32_0 : i32, i32
  }
  func.func @transform_4(%arg0: i32) -> (i32, i32) {
    %c0_i32 = arith.constant 0 : i32
    %c0_i32_0 = arith.constant 0 : i32
    %c0_i32_1 = arith.constant 0 : i32
    return %c0_i32, %c0_i32_0 : i32, i32
  }
  func.func @transform_5(%arg0: i32) -> (i32, i32) {
    %c0_i32 = arith.constant 0 : i32
    %c0_i32_0 = arith.constant 0 : i32
    %c0_i32_1 = arith.constant 0 : i32
    return %c0_i32, %c0_i32_0 : i32, i32
  }
  func.func @transform_6(%arg0: i32) -> (i32, i32) {
    %c0_i32 = arith.constant 0 : i32
    %c0_i32_0 = arith.constant 0 : i32
    %c0_i32_1 = arith.constant 0 : i32
    return %c0_i32, %c0_i32_0 : i32, i32
  }
  func.func @transform_7(%arg0: i32) -> (i32, i32) {
    %c0_i32 = arith.constant 0 : i32
    %c0_i32_0 = arith.constant 0 : i32
    %c0_i32_1 = arith.constant 0 : i32
    return %c0_i32, %c0_i32_0 : i32, i32
  }
  func.func @transform_8(%arg0: i32) -> (i32, i32) {
    %c0_i32 = arith.constant 0 : i32
    %c0_i32_0 = arith.constant 0 : i32
    %c0_i32_1 = arith.constant 0 : i32
    return %c0_i32, %c0_i32_0 : i32, i32
  }
  func.func @transform_9(%arg0: i32) -> (i32, i32) {
    %c0_i32 = arith.constant 0 : i32
    %c0_i32_0 = arith.constant 0 : i32
    %c0_i32_1 = arith.constant 0 : i32
    return %c0_i32, %c0_i32_0 : i32, i32
  }
  func.func @transform_10(%arg0: i32) -> (i32, i32) {
    %c0_i32 = arith.constant 0 : i32
    %c0_i32_0 = arith.constant 0 : i32
    %c0_i32_1 = arith.constant 0 : i32
    return %c0_i32, %c0_i32_0 : i32, i32
  }
}

</mosaic_0001>

<llo_original>
// kernel: tpu_custom_call.1
$region0: #{tpu_custom_call.1}
  #allocation0 [shape = 'u32[]', space=smem, size = 0x4, offset = 0x4, fixed_abs, tag = 'smem constant byte address 0x4 - core index']
  #allocation1 [shape = 'u32[72,128]{1,0:T(1,128)}', space=vmem, size = 0x9000, scoped, tag = 'internal scratch']
  %s0 = inlined_call_operand.hbm [shape: f32[14], index: 0, kind: input, shape index: {}]
  %s1 = inlined_call_operand.hbm [shape: f32[16,32], index: 1, kind: input, shape index: {}]
  %s2 = inlined_call_operand.hbm [shape: f32[32,96], index: 2, kind: input, shape index: {}]
  %s3 = inlined_call_operand.vmem [shape: f32[1,96], index: 3, kind: input, shape index: {}]
  %s4 = inlined_call_operand.hbm [shape: f32[32,32], index: 4, kind: input, shape index: {}]
  %s5 = inlined_call_operand.vmem [shape: f32[1,32], index: 5, kind: input, shape index: {}]
  %s6 = inlined_call_operand.vmem [shape: f32[1,8], index: 6, kind: input, shape index: {}]
  %s7 = inlined_call_operand.vmem [shape: f32[1,8], index: 7, kind: input, shape index: {}]
  %s8 = inlined_call_operand.vmem [shape: f32[1,8], index: 8, kind: input, shape index: {}]
  %s9 = inlined_call_operand.vmem [shape: f32[1,8], index: 9, kind: input, shape index: {}]
  %s10 = inlined_call_operand.hbm [shape: f32[16,32], index: 10, kind: output, shape index: {}]
  %s11 = sld [smem:[#allocation0]]
  $region66: #{tpu_custom_call.1} parent=0
    _
  %s13 = ssub.s32 1, %s11
  %s14 = scalar_select 0, %s13, %s11
  $region1: #{tpu_custom_call.1} parent=0
    #allocation2 [shape = 'u8[512]{0}', space=smem, size = 0x200, scoped, tag = 'input window, operand 0, single buffered']
    #allocation3 [shape = 's32[1]{0}', space=sflag, size = 0x4, scoped, tag = 'scoped memory for tpu_custom_call.1']
    #allocation4 [shape = 's32[1]{0}', space=sflag, size = 0x4, scoped, tag = 'scoped memory for tpu_custom_call.1']
    #allocation5 [shape = 's32[1]{0}', space=sflag, size = 0x4, scoped, tag = 'scoped memory for tpu_custom_call.1']
    #allocation6 [shape = 'u8[8192]{0}', space=vmem, size = 0x2000, scoped, tag = 'input window, operand 1, single buffered']
    #allocation7 [shape = 'u8[16384]{0}', space=vmem, size = 0x4000, scoped, tag = 'input window, operand 2, single buffered']
    #allocation8 [shape = 's32[1]{0}', space=sflag, size = 0x4, scoped, tag = 'scoped memory for tpu_custom_call.1']
    #allocation9 [shape = 'u8[16384]{0}', space=vmem, size = 0x4000, scoped, tag = 'input window, operand 4, single buffered']
    #allocation10 [shape = 'u8[8192]{0}', space=vmem, size = 0x2000, scoped, tag = 'output window, operand 0, single buffered']
    %15 = vsyncpa [#allocation5], 0
    %16 = vsyncpa [#allocation3], 0
    %17 = vsyncpa [#allocation8], 0
    %18 = vsyncpa [#allocation4], 0
    // Predicated region
    $region2: #{tpu_custom_call.1} parent=1 // pred_check
      _
    $region3: #{tpu_custom_call.1} parent=1 // pred_check_branch
      %20 = sbr.rel (0) target = $region5
    $region4: #{tpu_custom_call.1} parent=1 // pred_region
      %22 = vsyncadd [#allocation5], 0
      %s24 = sshll.u32 %s0, 4
      %s25 = int_to_ptr.hbm [resolvable:$true] %s24
      %27 = dma.hbm_to_smem %s25, 16, [#allocation2], [#allocation5]
    $region5: #{tpu_custom_call.1} parent=1 // pred_fallthru
      _
    // Predicated region
    $region6: #{tpu_custom_call.1} parent=1 // pred_check
      _
    $region7: #{tpu_custom_call.1} parent=1 // pred_check_branch
      %29 = sbr.rel (0) target = $region9
    $region8: #{tpu_custom_call.1} parent=1 // pred_region
      %31 = vsyncadd [#allocation3], 0
      %s32 = sshll.u32 %s1, 4
      %s33 = int_to_ptr.hbm [resolvable:$true] %s32
      %s34 = sshll.u32 [#allocation6], 4
      %s35 = int_to_ptr.vmem [resolvable:$true] %s34
      %40 = dma.hbm_to_vmem [thread:$0]  %s33, 256, %s35, [#allocation3], 128, 128, 8
    $region9: #{tpu_custom_call.1} parent=1 // pred_fallthru
      _
    // Predicated region
    $region10: #{tpu_custom_call.1} parent=1 // pred_check
      _
    $region11: #{tpu_custom_call.1} parent=1 // pred_check_branch
      %42 = sbr.rel (0) target = $region13
    $region12: #{tpu_custom_call.1} parent=1 // pred_region
      %44 = vsyncadd [#allocation8], 0
      %s45 = sshll.u32 %s2, 4
      %s46 = int_to_ptr.hbm [resolvable:$true] %s45
      %s47 = sshll.u32 [#allocation7], 4
      %s48 = int_to_ptr.vmem [resolvable:$true] %s47
      %53 = dma.hbm_to_vmem [thread:$0]  %s46, 512, %s48, [#allocation8], 128, 128, 8
    $region13: #{tpu_custom_call.1} parent=1 // pred_fallthru
      _
    // Predicated region
    $region14: #{tpu_custom_call.1} parent=1 // pred_check
      _
    $region15: #{tpu_custom_call.1} parent=1 // pred_check_branch
      %55 = sbr.rel (0) target = $region17
    $region16: #{tpu_custom_call.1} parent=1 // pred_region
      _
    $region17: #{tpu_custom_call.1} parent=1 // pred_fallthru
      _
    // Predicated region
    $region18: #{tpu_custom_call.1} parent=1 // pred_check
      _
    $region19: #{tpu_custom_call.1} parent=1 // pred_check_branch
      %57 = sbr.rel (0) target = $region21
    $region20: #{tpu_custom_call.1} parent=1 // pred_region
      %59 = vsyncadd [#allocation8], 0
      %s60 = sshll.u32 %s4, 4
      %s61 = int_to_ptr.hbm [resolvable:$true] %s60
      %s62 = sshll.u32 [#allocation9], 4
      %s63 = int_to_ptr.vmem [resolvable:$true] %s62
      %68 = dma.hbm_to_vmem [thread:$0]  %s61, 512, %s63, [#allocation8], 128, 128, 8
    $region21: #{tpu_custom_call.1} parent=1 // pred_fallthru
      _
    // Predicated region
    $region22: #{tpu_custom_call.1} parent=1 // pred_check
      _
    $region23: #{tpu_custom_call.1} parent=1 // pred_check_branch
      %70 = sbr.rel (0) target = $region25
    $region24: #{tpu_custom_call.1} parent=1 // pred_region
      _
    $region25: #{tpu_custom_call.1} parent=1 // pred_fallthru
      _
    // Predicated region
    $region26: #{tpu_custom_call.1} parent=1 // pred_check
      _
    $region27: #{tpu_custom_call.1} parent=1 // pred_check_branch
      %72 = sbr.rel (0) target = $region29
    $region28: #{tpu_custom_call.1} parent=1 // pred_region
      _
    $region29: #{tpu_custom_call.1} parent=1 // pred_fallthru
      _
    // Predicated region
    $region30: #{tpu_custom_call.1} parent=1 // pred_check
      _
    $region31: #{tpu_custom_call.1} parent=1 // pred_check_branch
      %74 = sbr.rel (0) target = $region33
    $region32: #{tpu_custom_call.1} parent=1 // pred_region
      _
    $region33: #{tpu_custom_call.1} parent=1 // pred_fallthru
      _
    // Predicated region
    $region34: #{tpu_custom_call.1} parent=1 // pred_check
      _
    $region35: #{tpu_custom_call.1} parent=1 // pred_check_branch
      %76 = sbr.rel (0) target = $region37
    $region36: #{tpu_custom_call.1} parent=1 // pred_region
      _
    $region37: #{tpu_custom_call.1} parent=1 // pred_fallthru
      _
    // Predicated region
    $region38: #{tpu_custom_call.1} parent=1 // pred_check
      _
    $region39: #{tpu_custom_call.1} parent=1 // pred_check_branch
      %78 = sbr.rel (0) target = $region41
    $region40: #{tpu_custom_call.1} parent=1 // pred_region
      _
    $region41: #{tpu_custom_call.1} parent=1 // pred_fallthru
      _
    // Predicated region
    $region42: #{tpu_custom_call.1} parent=1 // pred_check
      _
    $region43: #{tpu_custom_call.1} parent=1 // pred_check_branch
      %80 = sbr.rel (0) target = $region45
    $region44: #{tpu_custom_call.1} parent=1 // pred_region
      %82 = dma.done [#allocation5], 16
    $region45: #{tpu_custom_call.1} parent=1 // pred_fallthru
      _
    // Predicated region
    $region46: #{tpu_custom_call.1} parent=1 // pred_check
      _
    $region47: #{tpu_custom_call.1} parent=1 // pred_check_branch
      %84 = sbr.rel (0) target = $region49
    $region48: #{tpu_custom_call.1} parent=1 // pred_region
      %86 = dma.done [#allocation3], 256
    $region49: #{tpu_custom_call.1} parent=1 // pred_fallthru
      _
    // Predicated region
    $region50: #{tpu_custom_call.1} parent=1 // pred_check
      _
    $region51: #{tpu_custom_call.1} parent=1 // pred_check_branch
      %88 = sbr.rel (0) target = $region53
    $region52: #{tpu_custom_call.1} parent=1 // pred_region
      %90 = dma.done [#allocation8], 512
    $region53: #{tpu_custom_call.1} parent=1 // pred_fallthru
      _
    // Predicated region
    $region54: #{tpu_custom_call.1} parent=1 // pred_check
      _
    $region55: #{tpu_custom_call.1} parent=1 // pred_check_branch
      %92 = sbr.rel (0) target = $region57
    $region56: #{tpu_custom_call.1} parent=1 // pred_region
      %94 = dma.done [#allocation8], 512
    $region57: #{tpu_custom_call.1} parent=1 // pred_fallthru
      _
    %95 = sfence
    %s97 = sld [smem:[#allocation2]]
    %s98 = sld [smem:[#allocation2 + $0x1]]
    %s99 = sld [smem:[#allocation2 + $0x2]]
    %s100 = sld [smem:[#allocation2 + $0x3]]
    %s101 = sld [smem:[#allocation2 + $0x4]]
    %s102 = sld [smem:[#allocation2 + $0x5]]
    %s103 = sld [smem:[#allocation2 + $0x6]]
    %s104 = sld [smem:[#allocation2 + $0x7]]
    %s105 = sld [smem:[#allocation2 + $0x8]]
    %s106 = sld [smem:[#allocation2 + $0x9]]
    %s107 = sld [smem:[#allocation2 + $0xa]]
    %s108 = sld [smem:[#allocation2 + $0xb]]
    %s109 = sld [smem:[#allocation2 + $0xc]]
    %s110 = sld [smem:[#allocation2 + $0xd]]
    %v111 = vld [vmem:[#allocation6] sm:$0xff]
    %v112 = vld [vmem:[#allocation6 + $0x8] sm:$0xff]
    %v113 = vstv %s97
    %v114 = vmul.f32 %v111, %v113
    %v115 = vmul.f32 %v112, %v113
    %v116 = vstv %s98
    %v117 = vadd.f32 %v114, %v116
    %v118 = vadd.f32 %v115, %v116
    %v119 = vmax.f32 %v117, 0.0
    %v120 = vmax.f32 %v118, 0.0
    %v121 = vmin.f32 %v119, 15.0
    %v122 = vmin.f32 %v120, 15.0
    %v123 = vround.ne.pseudo %v121
    %v124 = vround.ne.pseudo %v122
    %v125 = vld [vmem:[#allocation7] sm:$0xff]
    %v126 = vld [vmem:[#allocation7 + $0x8] sm:$0xff]
    %v127 = vld [vmem:[#allocation7 + $0x10] sm:$0xff]
    %v128 = vld [vmem:[#allocation7 + $0x18] sm:$0xff]
    %v129 = vld [vmem:[%s3] sm:$0x1]
    %v131 = vperm.slane %v129, 0
    %vm133 = vcmask 261120
    %v135 = vsel %vm133, %v123, 0
    %v138 = vsel %vm133, %v124, 0
    %140 = vmatpush.msra.mxu0 0.0
    %141 = vmatpush.msra.mxu0 0.0
    %142 = vmatpush.msra.mxu0 0.0
    %143 = vmatpush.msra.mxu0 0.0
    %144 = vmatpush.msra.mxu0 0.0
    %145 = vmatpush.msra.mxu0 0.0
    %146 = vmatpush.msra.mxu0 0.0
    %147 = vmatpush.msra.mxu0 0.0
    %148 = vmatpush.msra.mxu0 0.0
    %149 = vmatpush.msra.mxu0 0.0
    %150 = vmatpush.msra.mxu0 0.0
    %151 = vmatpush.msra.mxu0 0.0
    %152 = vmatpush.msra.mxu0 %v128
    %153 = vmatpush.msra.mxu0 %v127
    %154 = vmatpush.msra.mxu0 %v126
    %155 = vmatpush.msra.mxu0 %v125
    %156 = vmatmul.f32.gmra.mxu0 %v135
    %v157 = vpop.f32.mrf.mxu0
    %v158 = vadd.f32 %v131, %v157
    %159 = vmatmul.f32.gmra.mxu0 %v138
    %v160 = vpop.f32.mrf.mxu0
    %v161 = vadd.f32 %v131, %v160
    %162 = vdwg.mxu0
    %165 = vrot.lane.b32.xlu0 %v158, 120
    %v166 = vpop.permute.xlu0 %165
    %167 = vrot.lane.b32.xlu0 %v161, 120
    %v168 = vpop.permute.xlu0 %167
    %171 = vrot.lane.b32.xlu0 %v158, 112
    %v172 = vpop.permute.xlu0 %171
    %173 = vrot.lane.b32.xlu0 %v161, 112
    %v174 = vpop.permute.xlu0 %173
    %177 = vrot.lane.b32.xlu0 %v158, 104
    %v178 = vpop.permute.xlu0 %177
    %179 = vrot.lane.b32.xlu0 %v161, 104
    %v180 = vpop.permute.xlu0 %179
    %v183 = vld [vmem:[%s6] sm:$0x1]
    %v184 = vld [vmem:[%s7] sm:$0x1]
    %v185 = vld [vmem:[%s8] sm:$0x1]
    %v186 = vld [vmem:[%s9] sm:$0x1]
    %vm187 = vcmask 64512
    %v188 = vsel %vm187, %v158, 0.0
    %189 = vadd.xlane.f32.xlu0 %v188
    %v190 = vpop.xlane.xlu0 %189
    %v191 = vsel %vm187, %v161, 0.0
    %192 = vadd.xlane.f32.xlu0 %v191
    %v193 = vpop.xlane.xlu0 %192
    %v194 = vsel %vm187, %v166, 0.0
    %195 = vadd.xlane.f32.xlu0 %v194
    %v196 = vpop.xlane.xlu0 %195
    %v197 = vsel %vm187, %v168, 0.0
    %198 = vadd.xlane.f32.xlu0 %v197
    %v199 = vpop.xlane.xlu0 %198
    %v200 = vsel %vm187, %v172, 0.0
    %201 = vadd.xlane.f32.xlu0 %v200
    %v202 = vpop.xlane.xlu0 %201
    %v203 = vsel %vm187, %v174, 0.0
    %204 = vadd.xlane.f32.xlu0 %v203
    %v205 = vpop.xlane.xlu0 %204
    %v206 = vsel %vm187, %v178, 0.0
    %207 = vadd.xlane.f32.xlu0 %v206
    %v208 = vpop.xlane.xlu0 %207
    %v209 = vsel %vm187, %v180, 0.0
    %210 = vadd.xlane.f32.xlu0 %v209
    %v211 = vpop.xlane.xlu0 %210
    %v212 = vrcp.pop 8.0
    %v213 = vmul.f32 8.0, %v212
    %v214 = vsub.f32 1.0, %v213
    %v215 = vmul.f32 %v212, %v214
    %v216 = vadd.f32 %v212, %v215
    %vm217 = vweird.f32 %v212
    %v218 = vsel %vm217, %v212, %v216
    %v219 = vmul.f32 %v190, %v218
    %v220 = vmul.f32 %v193, %v218
    %v221 = vmul.f32 %v196, %v218
    %v222 = vmul.f32 %v199, %v218
    %v223 = vmul.f32 %v202, %v218
    %v224 = vmul.f32 %v205, %v218
    %v225 = vmul.f32 %v208, %v218
    %v226 = vmul.f32 %v211, %v218
    %v227 = vsub.f32 %v158, %v219
    %v228 = vsub.f32 %v161, %v220
    %v229 = vsub.f32 %v166, %v221
    %v230 = vsub.f32 %v168, %v222
    %v231 = vsub.f32 %v172, %v223
    %v232 = vsub.f32 %v174, %v224
    %v233 = vsub.f32 %v178, %v225
    %v234 = vsub.f32 %v180, %v226
    %v235 = vmul.f32 %v227, %v227
    %v236 = vmul.f32 %v228, %v228
    %v237 = vmul.f32 %v229, %v229
    %v238 = vmul.f32 %v230, %v230
    %v239 = vmul.f32 %v231, %v231
    %v240 = vmul.f32 %v232, %v232
    %v241 = vmul.f32 %v233, %v233
    %v242 = vmul.f32 %v234, %v234
    %v243 = vsel %vm187, %v235, 0.0
    %244 = vadd.xlane.f32.xlu0 %v243
    %v245 = vpop.xlane.xlu0 %244
    %v246 = vsel %vm187, %v236, 0.0
    %247 = vadd.xlane.f32.xlu0 %v246
    %v248 = vpop.xlane.xlu0 %247
    %v249 = vsel %vm187, %v237, 0.0
    %250 = vadd.xlane.f32.xlu0 %v249
    %v251 = vpop.xlane.xlu0 %250
    %v252 = vsel %vm187, %v238, 0.0
    %253 = vadd.xlane.f32.xlu0 %v252
    %v254 = vpop.xlane.xlu0 %253
    %v255 = vsel %vm187, %v239, 0.0
    %256 = vadd.xlane.f32.xlu0 %v255
    %v257 = vpop.xlane.xlu0 %256
    %v258 = vsel %vm187, %v240, 0.0
    %259 = vadd.xlane.f32.xlu0 %v258
    %v260 = vpop.xlane.xlu0 %259
    %v261 = vsel %vm187, %v241, 0.0
    %262 = vadd.xlane.f32.xlu0 %v261
    %v263 = vpop.xlane.xlu0 %262
    %v264 = vsel %vm187, %v242, 0.0
    %265 = vadd.xlane.f32.xlu0 %v264
    %v266 = vpop.xlane.xlu0 %265
    %v267 = vmul.f32 %v245, %v218
    %v268 = vmul.f32 %v248, %v218
    %v269 = vmul.f32 %v251, %v218
    %v270 = vmul.f32 %v254, %v218
    %v271 = vmul.f32 %v257, %v218
    %v272 = vmul.f32 %v260, %v218
    %v273 = vmul.f32 %v263, %v218
    %v274 = vmul.f32 %v266, %v218
    %v275 = vadd.f32 %v267, 1e-05
    %v276 = vadd.f32 %v268, 1e-05
    %v277 = vadd.f32 %v269, 1e-05
    %v278 = vadd.f32 %v270, 1e-05
    %v279 = vadd.f32 %v271, 1e-05
    %v280 = vadd.f32 %v272, 1e-05
    %v281 = vadd.f32 %v273, 1e-05
    %v282 = vadd.f32 %v274, 1e-05
    %v283 = vrsqrt.pop %v275
    %v284 = vmul.f32 %v283, %v275
    %v285 = vmul.f32 %v284, %v283
    %v286 = vmul.f32 0.5, %v285
    %v287 = vsub.f32 1.5, %v286
    %v288 = vmul.f32 %v283, %v287
    %vm289 = vweird.f32 %v275
    %vm290 = vweird.f32 %v283
    %vm291 = vmor %vm289, %vm290
    %v292 = vsel %vm291, %v283, %v288
    %v293 = vrsqrt.pop %v276
    %v294 = vmul.f32 %v293, %v276
    %v295 = vmul.f32 %v294, %v293
    %v296 = vmul.f32 0.5, %v295
    %v297 = vsub.f32 1.5, %v296
    %v298 = vmul.f32 %v293, %v297
    %vm299 = vweird.f32 %v276
    %vm300 = vweird.f32 %v293
    %vm301 = vmor %vm299, %vm300
    %v302 = vsel %vm301, %v293, %v298
    %v303 = vrsqrt.pop %v277
    %v304 = vmul.f32 %v303, %v277
    %v305 = vmul.f32 %v304, %v303
    %v306 = vmul.f32 0.5, %v305
    %v307 = vsub.f32 1.5, %v306
    %v308 = vmul.f32 %v303, %v307
    %vm309 = vweird.f32 %v277
    %vm310 = vweird.f32 %v303
    %vm311 = vmor %vm309, %vm310
    %v312 = vsel %vm311, %v303, %v308
    %v313 = vrsqrt.pop %v278
    %v314 = vmul.f32 %v313, %v278
    %v315 = vmul.f32 %v314, %v313
    %v316 = vmul.f32 0.5, %v315
    %v317 = vsub.f32 1.5, %v316
    %v318 = vmul.f32 %v313, %v317
    %vm319 = vweird.f32 %v278
    %vm320 = vweird.f32 %v313
    %vm321 = vmor %vm319, %vm320
    %v322 = vsel %vm321, %v313, %v318
    %v323 = vrsqrt.pop %v279
    %v324 = vmul.f32 %v323, %v279
    %v325 = vmul.f32 %v324, %v323
    %v326 = vmul.f32 0.5, %v325
    %v327 = vsub.f32 1.5, %v326
    %v328 = vmul.f32 %v323, %v327
    %vm329 = vweird.f32 %v279
    %vm330 = vweird.f32 %v323
    %vm331 = vmor %vm329, %vm330
    %v332 = vsel %vm331, %v323, %v328
    %v333 = vrsqrt.pop %v280
    %v334 = vmul.f32 %v333, %v280
    %v335 = vmul.f32 %v334, %v333
    %v336 = vmul.f32 0.5, %v335
    %v337 = vsub.f32 1.5, %v336
    %v338 = vmul.f32 %v333, %v337
    %vm339 = vweird.f32 %v280
    %vm340 = vweird.f32 %v333
    %vm341 = vmor %vm339, %vm340
    %v342 = vsel %vm341, %v333, %v338
    %v343 = vrsqrt.pop %v281
    %v344 = vmul.f32 %v343, %v281
    %v345 = vmul.f32 %v344, %v343
    %v346 = vmul.f32 0.5, %v345
    %v347 = vsub.f32 1.5, %v346
    %v348 = vmul.f32 %v343, %v347
    %vm349 = vweird.f32 %v281
    %vm350 = vweird.f32 %v343
    %vm351 = vmor %vm349, %vm350
    %v352 = vsel %vm351, %v343, %v348
    %v353 = vrsqrt.pop %v282
    %v354 = vmul.f32 %v353, %v282
    %v355 = vmul.f32 %v354, %v353
    %v356 = vmul.f32 0.5, %v355
    %v357 = vsub.f32 1.5, %v356
    %v358 = vmul.f32 %v353, %v357
    %vm359 = vweird.f32 %v282
    %vm360 = vweird.f32 %v353
    %vm361 = vmor %vm359, %vm360
    %v362 = vsel %vm361, %v353, %v358
    %v363 = vmul.f32 %v227, %v292
    %v364 = vmul.f32 %v228, %v302
    %v365 = vmul.f32 %v229, %v312
    %v366 = vmul.f32 %v230, %v322
    %v367 = vmul.f32 %v231, %v332
    %v368 = vmul.f32 %v232, %v342
    %v369 = vmul.f32 %v233, %v352
    %v370 = vmul.f32 %v234, %v362
    %v372 = vperm.slane %v183, 0
    %v374 = vmul.f32 %v363, %v372
    %v375 = vmul.f32 %v364, %v372
    %v376 = vmul.f32 %v365, %v372
    %v377 = vmul.f32 %v366, %v372
    %v378 = vmul.f32 %v367, %v372
    %v379 = vmul.f32 %v368, %v372
    %v380 = vmul.f32 %v369, %v372
    %v381 = vmul.f32 %v370, %v372
    %v383 = vperm.slane %v184, 0
    %v385 = vadd.f32 %v374, %v383
    %v386 = vadd.f32 %v375, %v383
    %v387 = vadd.f32 %v376, %v383
    %v388 = vadd.f32 %v377, %v383
    %v389 = vadd.f32 %v378, %v383
    %v390 = vadd.f32 %v379, %v383
    %v391 = vadd.f32 %v380, %v383
    %v392 = vadd.f32 %v381, %v383
    %v393 = vstv %s99
    %v394 = vmul.f32 %v385, %v393
    %v395 = vmul.f32 %v386, %v393
    %v396 = vmul.f32 %v387, %v393
    %v397 = vmul.f32 %v388, %v393
    %v398 = vmul.f32 %v389, %v393
    %v399 = vmul.f32 %v390, %v393
    %v400 = vmul.f32 %v391, %v393
    %v401 = vmul.f32 %v392, %v393
    %v402 = vstv %s100
    %v403 = vadd.f32 %v394, %v402
    %v404 = vadd.f32 %v395, %v402
    %v405 = vadd.f32 %v396, %v402
    %v406 = vadd.f32 %v397, %v402
    %v407 = vadd.f32 %v398, %v402
    %v408 = vadd.f32 %v399, %v402
    %v409 = vadd.f32 %v400, %v402
    %v410 = vadd.f32 %v401, %v402
    %v411 = vmax.f32 %v403, 0.0
    %v412 = vmax.f32 %v404, 0.0
    %v413 = vmax.f32 %v405, 0.0
    %v414 = vmax.f32 %v406, 0.0
    %v415 = vmax.f32 %v407, 0.0
    %v416 = vmax.f32 %v408, 0.0
    %v417 = vmax.f32 %v409, 0.0
    %v418 = vmax.f32 %v410, 0.0
    %v419 = vmin.f32 %v411, 15.0
    %v420 = vmin.f32 %v412, 15.0
    %v421 = vmin.f32 %v413, 15.0
    %v422 = vmin.f32 %v414, 15.0
    %v423 = vmin.f32 %v415, 15.0
    %v424 = vmin.f32 %v416, 15.0
    %v425 = vmin.f32 %v417, 15.0
    %v426 = vmin.f32 %v418, 15.0
    %v427 = vround.ne.pseudo %v419
    %v428 = vround.ne.pseudo %v420
    %v429 = vround.ne.pseudo %v421
    %v430 = vround.ne.pseudo %v422
    %v431 = vround.ne.pseudo %v423
    %v432 = vround.ne.pseudo %v424
    %v433 = vround.ne.pseudo %v425
    %v434 = vround.ne.pseudo %v426
    %435 = vrot.lane.b32.xlu0 %v158, 96
    %v436 = vpop.permute.xlu0 %435
    %437 = vrot.lane.b32.xlu0 %v161, 96
    %v438 = vpop.permute.xlu0 %437
    %439 = vrot.lane.b32.xlu0 %v166, 96
    %v440 = vpop.permute.xlu0 %439
    %441 = vrot.lane.b32.xlu0 %v168, 96
    %v442 = vpop.permute.xlu0 %441
    %443 = vrot.lane.b32.xlu0 %v172, 96
    %v444 = vpop.permute.xlu0 %443
    %445 = vrot.lane.b32.xlu0 %v174, 96
    %v446 = vpop.permute.xlu0 %445
    %447 = vrot.lane.b32.xlu0 %v178, 96
    %v448 = vpop.permute.xlu0 %447
    %449 = vrot.lane.b32.xlu0 %v180, 96
    %v450 = vpop.permute.xlu0 %449
    %v459 = vsel %vm187, %v436, 0.0
    %460 = vadd.xlane.f32.xlu0 %v459
    %v461 = vpop.xlane.xlu0 %460
    %v462 = vsel %vm187, %v438, 0.0
    %463 = vadd.xlane.f32.xlu0 %v462
    %v464 = vpop.xlane.xlu0 %463
    %v465 = vsel %vm187, %v440, 0.0
    %466 = vadd.xlane.f32.xlu0 %v465
    %v467 = vpop.xlane.xlu0 %466
    %v468 = vsel %vm187, %v442, 0.0
    %469 = vadd.xlane.f32.xlu0 %v468
    %v470 = vpop.xlane.xlu0 %469
    %v471 = vsel %vm187, %v444, 0.0
    %472 = vadd.xlane.f32.xlu0 %v471
    %v473 = vpop.xlane.xlu0 %472
    %v474 = vsel %vm187, %v446, 0.0
    %475 = vadd.xlane.f32.xlu0 %v474
    %v476 = vpop.xlane.xlu0 %475
    %v477 = vsel %vm187, %v448, 0.0
    %478 = vadd.xlane.f32.xlu0 %v477
    %v479 = vpop.xlane.xlu0 %478
    %v480 = vsel %vm187, %v450, 0.0
    %481 = vadd.xlane.f32.xlu0 %v480
    %v482 = vpop.xlane.xlu0 %481
    %v483 = vmul.f32 %v461, %v218
    %v484 = vmul.f32 %v464, %v218
    %v485 = vmul.f32 %v467, %v218
    %v486 = vmul.f32 %v470, %v218
    %v487 = vmul.f32 %v473, %v218
    %v488 = vmul.f32 %v476, %v218
    %v489 = vmul.f32 %v479, %v218
    %v490 = vmul.f32 %v482, %v218
    %v491 = vsub.f32 %v158, %v483
    %v492 = vsub.f32 %v161, %v484
    %v493 = vsub.f32 %v166, %v485
    %v494 = vsub.f32 %v168, %v486
    %v495 = vsub.f32 %v172, %v487
    %v496 = vsub.f32 %v174, %v488
    %v497 = vsub.f32 %v178, %v489
    %v498 = vsub.f32 %v180, %v490
    %v499 = vmul.f32 %v491, %v491
    %v500 = vmul.f32 %v492, %v492
    %v501 = vmul.f32 %v493, %v493
    %v502 = vmul.f32 %v494, %v494
    %v503 = vmul.f32 %v495, %v495
    %v504 = vmul.f32 %v496, %v496
    %v505 = vmul.f32 %v497, %v497
    %v506 = vmul.f32 %v498, %v498
    %515 = vrot.lane.b32.xlu0 %v499, 96
    %v516 = vpop.permute.xlu0 %515
    %517 = vrot.lane.b32.xlu0 %v500, 96
    %v518 = vpop.permute.xlu0 %517
    %519 = vrot.lane.b32.xlu0 %v501, 96
    %v520 = vpop.permute.xlu0 %519
    %521 = vrot.lane.b32.xlu0 %v502, 96
    %v522 = vpop.permute.xlu0 %521
    %523 = vrot.lane.b32.xlu0 %v503, 96
    %v524 = vpop.permute.xlu0 %523
    %525 = vrot.lane.b32.xlu0 %v504, 96
    %v526 = vpop.permute.xlu0 %525
    %527 = vrot.lane.b32.xlu0 %v505, 96
    %v528 = vpop.permute.xlu0 %527
    %529 = vrot.lane.b32.xlu0 %v506, 96
    %v530 = vpop.permute.xlu0 %529
    %v539 = vsel %vm187, %v516, 0.0
    %540 = vadd.xlane.f32.xlu0 %v539
    %v541 = vpop.xlane.xlu0 %540
    %v542 = vsel %vm187, %v518, 0.0
    %543 = vadd.xlane.f32.xlu0 %v542
    %v544 = vpop.xlane.xlu0 %543
    %v545 = vsel %vm187, %v520, 0.0
    %546 = vadd.xlane.f32.xlu0 %v545
    %v547 = vpop.xlane.xlu0 %546
    %v548 = vsel %vm187, %v522, 0.0
    %549 = vadd.xlane.f32.xlu0 %v548
    %v550 = vpop.xlane.xlu0 %549
    %v551 = vsel %vm187, %v524, 0.0
    %552 = vadd.xlane.f32.xlu0 %v551
    %v553 = vpop.xlane.xlu0 %552
    %v554 = vsel %vm187, %v526, 0.0
    %555 = vadd.xlane.f32.xlu0 %v554
    %v556 = vpop.xlane.xlu0 %555
    %v557 = vsel %vm187, %v528, 0.0
    %558 = vadd.xlane.f32.xlu0 %v557
    %v559 = vpop.xlane.xlu0 %558
    %v560 = vsel %vm187, %v530, 0.0
    %561 = vadd.xlane.f32.xlu0 %v560
    %v562 = vpop.xlane.xlu0 %561
    %v563 = vmul.f32 %v541, %v218
    %v564 = vmul.f32 %v544, %v218
    %v565 = vmul.f32 %v547, %v218
    %v566 = vmul.f32 %v550, %v218
    %v567 = vmul.f32 %v553, %v218
    %v568 = vmul.f32 %v556, %v218
    %v569 = vmul.f32 %v559, %v218
    %v570 = vmul.f32 %v562, %v218
    %v571 = vadd.f32 %v563, 1e-05
    %v572 = vadd.f32 %v564, 1e-05
    %v573 = vadd.f32 %v565, 1e-05
    %v574 = vadd.f32 %v566, 1e-05
    %v575 = vadd.f32 %v567, 1e-05
    %v576 = vadd.f32 %v568, 1e-05
    %v577 = vadd.f32 %v569, 1e-05
    %v578 = vadd.f32 %v570, 1e-05
    %v579 = vrsqrt.pop %v571
    %v580 = vmul.f32 %v579, %v571
    %v581 = vmul.f32 %v580, %v579
    %v582 = vmul.f32 0.5, %v581
    %v583 = vsub.f32 1.5, %v582
    %v584 = vmul.f32 %v579, %v583
    %vm585 = vweird.f32 %v571
    %vm586 = vweird.f32 %v579
    %vm587 = vmor %vm585, %vm586
    %v588 = vsel %vm587, %v579, %v584
    %v589 = vrsqrt.pop %v572
    %v590 = vmul.f32 %v589, %v572
    %v591 = vmul.f32 %v590, %v589
    %v592 = vmul.f32 0.5, %v591
    %v593 = vsub.f32 1.5, %v592
    %v594 = vmul.f32 %v589, %v593
    %vm595 = vweird.f32 %v572
    %vm596 = vweird.f32 %v589
    %vm597 = vmor %vm595, %vm596
    %v598 = vsel %vm597, %v589, %v594
    %v599 = vrsqrt.pop %v573
    %v600 = vmul.f32 %v599, %v573
    %v601 = vmul.f32 %v600, %v599
    %v602 = vmul.f32 0.5, %v601
    %v603 = vsub.f32 1.5, %v602
    %v604 = vmul.f32 %v599, %v603
    %vm605 = vweird.f32 %v573
    %vm606 = vweird.f32 %v599
    %vm607 = vmor %vm605, %vm606
    %v608 = vsel %vm607, %v599, %v604
    %v609 = vrsqrt.pop %v574
    %v610 = vmul.f32 %v609, %v574
    %v611 = vmul.f32 %v610, %v609
    %v612 = vmul.f32 0.5, %v611
    %v613 = vsub.f32 1.5, %v612
    %v614 = vmul.f32 %v609, %v613
    %vm615 = vweird.f32 %v574
    %vm616 = vweird.f32 %v609
    %vm617 = vmor %vm615, %vm616
    %v618 = vsel %vm617, %v609, %v614
    %v619 = vrsqrt.pop %v575
    %v620 = vmul.f32 %v619, %v575
    %v621 = vmul.f32 %v620, %v619
    %v622 = vmul.f32 0.5, %v621
    %v623 = vsub.f32 1.5, %v622
    %v624 = vmul.f32 %v619, %v623
    %vm625 = vweird.f32 %v575
    %vm626 = vweird.f32 %v619
    %vm627 = vmor %vm625, %vm626
    %v628 = vsel %vm627, %v619, %v624
    %v629 = vrsqrt.pop %v576
    %v630 = vmul.f32 %v629, %v576
    %v631 = vmul.f32 %v630, %v629
    %v632 = vmul.f32 0.5, %v631
    %v633 = vsub.f32 1.5, %v632
    %v634 = vmul.f32 %v629, %v633
    %vm635 = vweird.f32 %v576
    %vm636 = vweird.f32 %v629
    %vm637 = vmor %vm635, %vm636
    %v638 = vsel %vm637, %v629, %v634
    %v639 = vrsqrt.pop %v577
    %v640 = vmul.f32 %v639, %v577
    %v641 = vmul.f32 %v640, %v639
    %v642 = vmul.f32 0.5, %v641
    %v643 = vsub.f32 1.5, %v642
    %v644 = vmul.f32 %v639, %v643
    %vm645 = vweird.f32 %v577
    %vm646 = vweird.f32 %v639
    %vm647 = vmor %vm645, %vm646
    %v648 = vsel %vm647, %v639, %v644
    %v649 = vrsqrt.pop %v578
    %v650 = vmul.f32 %v649, %v578
    %v651 = vmul.f32 %v650, %v649
    %v652 = vmul.f32 0.5, %v651
    %v653 = vsub.f32 1.5, %v652
    %v654 = vmul.f32 %v649, %v653
    %vm655 = vweird.f32 %v578
    %vm656 = vweird.f32 %v649
    %vm657 = vmor %vm655, %vm656
    %v658 = vsel %vm657, %v649, %v654
    %v659 = vmul.f32 %v491, %v588
    %v660 = vmul.f32 %v492, %v598
    %v661 = vmul.f32 %v493, %v608
    %v662 = vmul.f32 %v494, %v618
    %v663 = vmul.f32 %v495, %v628
    %v664 = vmul.f32 %v496, %v638
    %v665 = vmul.f32 %v497, %v648
    %v666 = vmul.f32 %v498, %v658
    %v668 = vperm.slane %v185, 0
    %669 = vrot.lane.b32.xlu0 %v668, 32
    %v670 = vpop.permute.xlu0 %669
    %v672 = vmul.f32 %v659, %v670
    %v673 = vmul.f32 %v660, %v670
    %v674 = vmul.f32 %v661, %v670
    %v675 = vmul.f32 %v662, %v670
    %v676 = vmul.f32 %v663, %v670
    %v677 = vmul.f32 %v664, %v670
    %v678 = vmul.f32 %v665, %v670
    %v679 = vmul.f32 %v666, %v670
    %v681 = vperm.slane %v186, 0
    %682 = vrot.lane.b32.xlu0 %v681, 32
    %v683 = vpop.permute.xlu0 %682
    %v685 = vadd.f32 %v672, %v683
    %v686 = vadd.f32 %v673, %v683
    %v687 = vadd.f32 %v674, %v683
    %v688 = vadd.f32 %v675, %v683
    %v689 = vadd.f32 %v676, %v683
    %v690 = vadd.f32 %v677, %v683
    %v691 = vadd.f32 %v678, %v683
    %v692 = vadd.f32 %v679, %v683
    %v693 = vstv %s101
    %v694 = vmul.f32 %v685, %v693
    %v695 = vmul.f32 %v686, %v693
    %v696 = vmul.f32 %v687, %v693
    %v697 = vmul.f32 %v688, %v693
    %v698 = vmul.f32 %v689, %v693
    %v699 = vmul.f32 %v690, %v693
    %v700 = vmul.f32 %v691, %v693
    %v701 = vmul.f32 %v692, %v693
    %v702 = vstv %s102
    %v703 = vadd.f32 %v694, %v702
    %v704 = vadd.f32 %v695, %v702
    %v705 = vadd.f32 %v696, %v702
    %v706 = vadd.f32 %v697, %v702
    %v707 = vadd.f32 %v698, %v702
    %v708 = vadd.f32 %v699, %v702
    %v709 = vadd.f32 %v700, %v702
    %v710 = vadd.f32 %v701, %v702
    %v711 = vmax.f32 %v703, 0.0
    %v712 = vmax.f32 %v704, 0.0
    %v713 = vmax.f32 %v705, 0.0
    %v714 = vmax.f32 %v706, 0.0
    %v715 = vmax.f32 %v707, 0.0
    %v716 = vmax.f32 %v708, 0.0
    %v717 = vmax.f32 %v709, 0.0
    %v718 = vmax.f32 %v710, 0.0
    %v719 = vmin.f32 %v711, 15.0
    %v720 = vmin.f32 %v712, 15.0
    %v721 = vmin.f32 %v713, 15.0
    %v722 = vmin.f32 %v714, 15.0
    %v723 = vmin.f32 %v715, 15.0
    %v724 = vmin.f32 %v716, 15.0
    %v725 = vmin.f32 %v717, 15.0
    %v726 = vmin.f32 %v718, 15.0
    %v727 = vround.ne.pseudo %v719
    %v728 = vround.ne.pseudo %v720
    %v729 = vround.ne.pseudo %v721
    %v730 = vround.ne.pseudo %v722
    %v731 = vround.ne.pseudo %v723
    %v732 = vround.ne.pseudo %v724
    %v733 = vround.ne.pseudo %v725
    %v734 = vround.ne.pseudo %v726
    %v735 = vstv %s103
    %v736 = vmul.f32 %v158, %v735
    %v737 = vmul.f32 %v161, %v735
    %v738 = vmul.f32 %v166, %v735
    %v739 = vmul.f32 %v168, %v735
    %v740 = vmul.f32 %v172, %v735
    %v741 = vmul.f32 %v174, %v735
    %v742 = vmul.f32 %v178, %v735
    %v743 = vmul.f32 %v180, %v735
    %v744 = vstv %s104
    %v745 = vadd.f32 %v736, %v744
    %v746 = vadd.f32 %v737, %v744
    %v747 = vadd.f32 %v738, %v744
    %v748 = vadd.f32 %v739, %v744
    %v749 = vadd.f32 %v740, %v744
    %v750 = vadd.f32 %v741, %v744
    %v751 = vadd.f32 %v742, %v744
    %v752 = vadd.f32 %v743, %v744
    %v753 = vmax.f32 %v745, 0.0
    %v754 = vmax.f32 %v746, 0.0
    %v755 = vmax.f32 %v747, 0.0
    %v756 = vmax.f32 %v748, 0.0
    %v757 = vmax.f32 %v749, 0.0
    %v758 = vmax.f32 %v750, 0.0
    %v759 = vmax.f32 %v751, 0.0
    %v760 = vmax.f32 %v752, 0.0
    %v761 = vmin.f32 %v753, 15.0
    %v762 = vmin.f32 %v754, 15.0
    %v763 = vmin.f32 %v755, 15.0
    %v764 = vmin.f32 %v756, 15.0
    %v765 = vmin.f32 %v757, 15.0
    %v766 = vmin.f32 %v758, 15.0
    %v767 = vmin.f32 %v759, 15.0
    %v768 = vmin.f32 %v760, 15.0
    %v769 = vround.ne.pseudo %v761
    %v770 = vround.ne.pseudo %v762
    %v771 = vround.ne.pseudo %v763
    %v772 = vround.ne.pseudo %v764
    %v773 = vround.ne.pseudo %v765
    %v774 = vround.ne.pseudo %v766
    %v775 = vround.ne.pseudo %v767
    %v776 = vround.ne.pseudo %v768
    %v777 = vpack.c.bf16 %v427, %v427
    %v778 = vpack.c.bf16 %v428, %v428
    %v779 = vpack.c.bf16 %v429, %v429
    %v780 = vpack.c.bf16 %v430, %v430
    %v781 = vpack.c.bf16 %v431, %v431
    %v782 = vpack.c.bf16 %v432, %v432
    %v783 = vpack.c.bf16 %v433, %v433
    %v784 = vpack.c.bf16 %v434, %v434
    %v785 = vpack.c.bf16 %v727, %v727
    %v786 = vpack.c.bf16 %v728, %v728
    %v787 = vpack.c.bf16 %v729, %v729
    %v788 = vpack.c.bf16 %v730, %v730
    %v789 = vpack.c.bf16 %v731, %v731
    %v790 = vpack.c.bf16 %v732, %v732
    %v791 = vpack.c.bf16 %v733, %v733
    %v792 = vpack.c.bf16 %v734, %v734
    %v794 = vunpack.c.l.b16 %v785
    %v795 = vpack.c.b16 %v794, %v794
    %796 = vrot.lane.b32.xlu0 %v795, 96
    %v797 = vpop.permute.xlu0 %796
    %v799 = vsel %vm187, %v777, 0
    %v802 = vsel %vm187, %v797, 0
    %804 = vmatpush.bf16.xpose.msra.mxu0 0
    %805 = vmatpush.bf16.xpose.msra.mxu0 0
    %806 = vmatpush.bf16.xpose.msra.mxu0 0
    %807 = vmatpush.bf16.xpose.msra.mxu0 0
    %808 = vmatpush.bf16.xpose.msra.mxu0 0
    %809 = vmatpush.bf16.xpose.msra.mxu0 0
    %810 = vmatpush.bf16.xpose.msra.mxu0 0
    %811 = vmatpush.bf16.xpose.msra.mxu0 %v802
    %812 = vmatmul.bf16.gmra.mxu0 %v799
    %v813 = vpop.f32.mrf.mxu0
    %v814 = vadd.f32 0.0, %v813
    %v815 = vpop.f32.mrf.mxu0
    %816 = vdwg.mxu0
    %v818 = vunpack.c.l.b16 %v786
    %v819 = vpack.c.b16 %v818, %v818
    %820 = vrot.lane.b32.xlu0 %v819, 96
    %v821 = vpop.permute.xlu0 %820
    %v823 = vsel %vm187, %v778, 0
    %v826 = vsel %vm187, %v821, 0
    %828 = vmatpush.bf16.xpose.msra.mxu0 0
    %829 = vmatpush.bf16.xpose.msra.mxu0 0
    %830 = vmatpush.bf16.xpose.msra.mxu0 0
    %831 = vmatpush.bf16.xpose.msra.mxu0 0
    %832 = vmatpush.bf16.xpose.msra.mxu0 0
    %833 = vmatpush.bf16.xpose.msra.mxu0 0
    %834 = vmatpush.bf16.xpose.msra.mxu0 0
    %835 = vmatpush.bf16.xpose.msra.mxu0 %v826
    %836 = vmatmul.bf16.gmra.mxu0 %v823
    %v837 = vpop.f32.mrf.mxu0
    %v838 = vadd.f32 0.0, %v837
    %v839 = vpop.f32.mrf.mxu0
    %840 = vdwg.mxu0
    %v842 = vunpack.c.l.b16 %v787
    %v843 = vpack.c.b16 %v842, %v842
    %844 = vrot.lane.b32.xlu0 %v843, 96
    %v845 = vpop.permute.xlu0 %844
    %v847 = vsel %vm187, %v779, 0
    %v850 = vsel %vm187, %v845, 0
    %852 = vmatpush.bf16.xpose.msra.mxu0 0
    %853 = vmatpush.bf16.xpose.msra.mxu0 0
    %854 = vmatpush.bf16.xpose.msra.mxu0 0
    %855 = vmatpush.bf16.xpose.msra.mxu0 0
    %856 = vmatpush.bf16.xpose.msra.mxu0 0
    %857 = vmatpush.bf16.xpose.msra.mxu0 0
    %858 = vmatpush.bf16.xpose.msra.mxu0 0
    %859 = vmatpush.bf16.xpose.msra.mxu0 %v850
    %860 = vmatmul.bf16.gmra.mxu0 %v847
    %v861 = vpop.f32.mrf.mxu0
    %v862 = vadd.f32 0.0, %v861
    %v863 = vpop.f32.mrf.mxu0
    %864 = vdwg.mxu0
    %v866 = vunpack.c.l.b16 %v788
    %v867 = vpack.c.b16 %v866, %v866
    %868 = vrot.lane.b32.xlu0 %v867, 96
    %v869 = vpop.permute.xlu0 %868
    %v871 = vsel %vm187, %v780, 0
    %v874 = vsel %vm187, %v869, 0
    %876 = vmatpush.bf16.xpose.msra.mxu0 0
    %877 = vmatpush.bf16.xpose.msra.mxu0 0
    %878 = vmatpush.bf16.xpose.msra.mxu0 0
    %879 = vmatpush.bf16.xpose.msra.mxu0 0
    %880 = vmatpush.bf16.xpose.msra.mxu0 0
    %881 = vmatpush.bf16.xpose.msra.mxu0 0
    %882 = vmatpush.bf16.xpose.msra.mxu0 0
    %883 = vmatpush.bf16.xpose.msra.mxu0 %v874
    %884 = vmatmul.bf16.gmra.mxu0 %v871
    %v885 = vpop.f32.mrf.mxu0
    %v886 = vadd.f32 0.0, %v885
    %v887 = vpop.f32.mrf.mxu0
    %888 = vdwg.mxu0
    %v890 = vunpack.c.l.b16 %v789
    %v891 = vpack.c.b16 %v890, %v890
    %892 = vrot.lane.b32.xlu0 %v891, 96
    %v893 = vpop.permute.xlu0 %892
    %v895 = vsel %vm187, %v781, 0
    %v898 = vsel %vm187, %v893, 0
    %900 = vmatpush.bf16.xpose.msra.mxu0 0
    %901 = vmatpush.bf16.xpose.msra.mxu0 0
    %902 = vmatpush.bf16.xpose.msra.mxu0 0
    %903 = vmatpush.bf16.xpose.msra.mxu0 0
    %904 = vmatpush.bf16.xpose.msra.mxu0 0
    %905 = vmatpush.bf16.xpose.msra.mxu0 0
    %906 = vmatpush.bf16.xpose.msra.mxu0 0
    %907 = vmatpush.bf16.xpose.msra.mxu0 %v898
    %908 = vmatmul.bf16.gmra.mxu0 %v895
    %v909 = vpop.f32.mrf.mxu0
    %v910 = vadd.f32 0.0, %v909
    %v911 = vpop.f32.mrf.mxu0
    %912 = vdwg.mxu0
    %v914 = vunpack.c.l.b16 %v790
    %v915 = vpack.c.b16 %v914, %v914
    %916 = vrot.lane.b32.xlu0 %v915, 96
    %v917 = vpop.permute.xlu0 %916
    %v919 = vsel %vm187, %v782, 0
    %v922 = vsel %vm187, %v917, 0
    %924 = vmatpush.bf16.xpose.msra.mxu0 0
    %925 = vmatpush.bf16.xpose.msra.mxu0 0
    %926 = vmatpush.bf16.xpose.msra.mxu0 0
    %927 = vmatpush.bf16.xpose.msra.mxu0 0
    %928 = vmatpush.bf16.xpose.msra.mxu0 0
    %929 = vmatpush.bf16.xpose.msra.mxu0 0
    %930 = vmatpush.bf16.xpose.msra.mxu0 0
    %931 = vmatpush.bf16.xpose.msra.mxu0 %v922
    %932 = vmatmul.bf16.gmra.mxu0 %v919
    %v933 = vpop.f32.mrf.mxu0
    %v934 = vadd.f32 0.0, %v933
    %v935 = vpop.f32.mrf.mxu0
    %936 = vdwg.mxu0
    %v938 = vunpack.c.l.b16 %v791
    %v939 = vpack.c.b16 %v938, %v938
    %940 = vrot.lane.b32.xlu0 %v939, 96
    %v941 = vpop.permute.xlu0 %940
    %v943 = vsel %vm187, %v783, 0
    %v946 = vsel %vm187, %v941, 0
    %948 = vmatpush.bf16.xpose.msra.mxu0 0
    %949 = vmatpush.bf16.xpose.msra.mxu0 0
    %950 = vmatpush.bf16.xpose.msra.mxu0 0
    %951 = vmatpush.bf16.xpose.msra.mxu0 0
    %952 = vmatpush.bf16.xpose.msra.mxu0 0
    %953 = vmatpush.bf16.xpose.msra.mxu0 0
    %954 = vmatpush.bf16.xpose.msra.mxu0 0
    %955 = vmatpush.bf16.xpose.msra.mxu0 %v946
    %956 = vmatmul.bf16.gmra.mxu0 %v943
    %v957 = vpop.f32.mrf.mxu0
    %v958 = vadd.f32 0.0, %v957
    %v959 = vpop.f32.mrf.mxu0
    %960 = vdwg.mxu0
    %v962 = vunpack.c.l.b16 %v792
    %v963 = vpack.c.b16 %v962, %v962
    %964 = vrot.lane.b32.xlu0 %v963, 96
    %v965 = vpop.permute.xlu0 %964
    %v967 = vsel %vm187, %v784, 0
    %v970 = vsel %vm187, %v965, 0
    %972 = vmatpush.bf16.xpose.msra.mxu0 0
    %973 = vmatpush.bf16.xpose.msra.mxu0 0
    %974 = vmatpush.bf16.xpose.msra.mxu0 0
    %975 = vmatpush.bf16.xpose.msra.mxu0 0
    %976 = vmatpush.bf16.xpose.msra.mxu0 0
    %977 = vmatpush.bf16.xpose.msra.mxu0 0
    %978 = vmatpush.bf16.xpose.msra.mxu0 0
    %979 = vmatpush.bf16.xpose.msra.mxu0 %v970
    %980 = vmatmul.bf16.gmra.mxu0 %v967
    %v981 = vpop.f32.mrf.mxu0
    %v982 = vadd.f32 0.0, %v981
    %v983 = vpop.f32.mrf.mxu0
    %984 = vdwg.mxu0
    %v985 = vstv %s105
    %v986 = vmul.f32 %v814, %v985
    %v987 = vmul.f32 %v838, %v985
    %v988 = vmul.f32 %v862, %v985
    %v989 = vmul.f32 %v886, %v985
    %v990 = vmul.f32 %v910, %v985
    %v991 = vmul.f32 %v934, %v985
    %v992 = vmul.f32 %v958, %v985
    %v993 = vmul.f32 %v982, %v985
    %v994 = vsel %vm187, %v986, -inf
    %995 = vmax.xlane.f32.xlu0 %v994
    %v996 = vpop.xlane.xlu0 %995
    %v997 = vsel %vm187, %v987, -inf
    %998 = vmax.xlane.f32.xlu0 %v997
    %v999 = vpop.xlane.xlu0 %998
    %v1000 = vsel %vm187, %v988, -inf
    %1001 = vmax.xlane.f32.xlu0 %v1000
    %v1002 = vpop.xlane.xlu0 %1001
    %v1003 = vsel %vm187, %v989, -inf
    %1004 = vmax.xlane.f32.xlu0 %v1003
    %v1005 = vpop.xlane.xlu0 %1004
    %v1006 = vsel %vm187, %v990, -inf
    %1007 = vmax.xlane.f32.xlu0 %v1006
    %v1008 = vpop.xlane.xlu0 %1007
    %v1009 = vsel %vm187, %v991, -inf
    %1010 = vmax.xlane.f32.xlu0 %v1009
    %v1011 = vpop.xlane.xlu0 %1010
    %v1012 = vsel %vm187, %v992, -inf
    %1013 = vmax.xlane.f32.xlu0 %v1012
    %v1014 = vpop.xlane.xlu0 %1013
    %v1015 = vsel %vm187, %v993, -inf
    %1016 = vmax.xlane.f32.xlu0 %v1015
    %v1017 = vpop.xlane.xlu0 %1016
    %v1018 = vsub.f32 %v986, %v996
    %v1019 = vsub.f32 %v987, %v999
    %v1020 = vsub.f32 %v988, %v1002
    %v1021 = vsub.f32 %v989, %v1005
    %v1022 = vsub.f32 %v990, %v1008
    %v1023 = vsub.f32 %v991, %v1011
    %v1024 = vsub.f32 %v992, %v1014
    %v1025 = vsub.f32 %v993, %v1017
    %v1026 = vmul.f32 %v1018, 1.442695
    %v1027 = vpow.pop %v1026
    %v1028 = vmul.f32 %v1019, 1.442695
    %v1029 = vpow.pop %v1028
    %v1030 = vmul.f32 %v1020, 1.442695
    %v1031 = vpow.pop %v1030
    %v1032 = vmul.f32 %v1021, 1.442695
    %v1033 = vpow.pop %v1032
    %v1034 = vmul.f32 %v1022, 1.442695
    %v1035 = vpow.pop %v1034
    %v1036 = vmul.f32 %v1023, 1.442695
    %v1037 = vpow.pop %v1036
    %v1038 = vmul.f32 %v1024, 1.442695
    %v1039 = vpow.pop %v1038
    %v1040 = vmul.f32 %v1025, 1.442695
    %v1041 = vpow.pop %v1040
    %v1042 = vsel %vm187, %v1027, 0.0
    %1043 = vadd.xlane.f32.xlu0 %v1042
    %v1044 = vpop.xlane.xlu0 %1043
    %v1045 = vsel %vm187, %v1029, 0.0
    %1046 = vadd.xlane.f32.xlu0 %v1045
    %v1047 = vpop.xlane.xlu0 %1046
    %v1048 = vsel %vm187, %v1031, 0.0
    %1049 = vadd.xlane.f32.xlu0 %v1048
    %v1050 = vpop.xlane.xlu0 %1049
    %v1051 = vsel %vm187, %v1033, 0.0
    %1052 = vadd.xlane.f32.xlu0 %v1051
    %v1053 = vpop.xlane.xlu0 %1052
    %v1054 = vsel %vm187, %v1035, 0.0
    %1055 = vadd.xlane.f32.xlu0 %v1054
    %v1056 = vpop.xlane.xlu0 %1055
    %v1057 = vsel %vm187, %v1037, 0.0
    %1058 = vadd.xlane.f32.xlu0 %v1057
    %v1059 = vpop.xlane.xlu0 %1058
    %v1060 = vsel %vm187, %v1039, 0.0
    %1061 = vadd.xlane.f32.xlu0 %v1060
    %v1062 = vpop.xlane.xlu0 %1061
    %v1063 = vsel %vm187, %v1041, 0.0
    %1064 = vadd.xlane.f32.xlu0 %v1063
    %v1065 = vpop.xlane.xlu0 %1064
    %v1066 = vrcp.pop %v1044
    %v1067 = vmul.f32 %v1044, %v1066
    %v1068 = vsub.f32 1.0, %v1067
    %v1069 = vmul.f32 %v1066, %v1068
    %v1070 = vadd.f32 %v1066, %v1069
    %vm1071 = vweird.f32 %v1044
    %vm1072 = vweird.f32 %v1066
    %vm1073 = vmor %vm1071, %vm1072
    %v1074 = vsel %vm1073, %v1066, %v1070
    %v1075 = vand.u32 2147483647, %v1044
    %vm1076 = vcmp.eq.f32.partialorder %v1075, 8.507059e+37
    %v1077 = vand.u32 %v1044, 2147483648
    %v1078 = vor.u32 1.1754944e-38, %v1077
    %v1079 = vsel %vm1076, %v1078, %v1074
    %v1080 = vrcp.pop %v1047
    %v1081 = vmul.f32 %v1047, %v1080
    %v1082 = vsub.f32 1.0, %v1081
    %v1083 = vmul.f32 %v1080, %v1082
    %v1084 = vadd.f32 %v1080, %v1083
    %vm1085 = vweird.f32 %v1047
    %vm1086 = vweird.f32 %v1080
    %vm1087 = vmor %vm1085, %vm1086
    %v1088 = vsel %vm1087, %v1080, %v1084
    %v1089 = vand.u32 2147483647, %v1047
    %vm1090 = vcmp.eq.f32.partialorder %v1089, 8.507059e+37
    %v1091 = vand.u32 %v1047, 2147483648
    %v1092 = vor.u32 1.1754944e-38, %v1091
    %v1093 = vsel %vm1090, %v1092, %v1088
    %v1094 = vrcp.pop %v1050
    %v1095 = vmul.f32 %v1050, %v1094
    %v1096 = vsub.f32 1.0, %v1095
    %v1097 = vmul.f32 %v1094, %v1096
    %v1098 = vadd.f32 %v1094, %v1097
    %vm1099 = vweird.f32 %v1050
    %vm1100 = vweird.f32 %v1094
    %vm1101 = vmor %vm1099, %vm1100
    %v1102 = vsel %vm1101, %v1094, %v1098
    %v1103 = vand.u32 2147483647, %v1050
    %vm1104 = vcmp.eq.f32.partialorder %v1103, 8.507059e+37
    %v1105 = vand.u32 %v1050, 2147483648
    %v1106 = vor.u32 1.1754944e-38, %v1105
    %v1107 = vsel %vm1104, %v1106, %v1102
    %v1108 = vrcp.pop %v1053
    %v1109 = vmul.f32 %v1053, %v1108
    %v1110 = vsub.f32 1.0, %v1109
    %v1111 = vmul.f32 %v1108, %v1110
    %v1112 = vadd.f32 %v1108, %v1111
    %vm1113 = vweird.f32 %v1053
    %vm1114 = vweird.f32 %v1108
    %vm1115 = vmor %vm1113, %vm1114
    %v1116 = vsel %vm1115, %v1108, %v1112
    %v1117 = vand.u32 2147483647, %v1053
    %vm1118 = vcmp.eq.f32.partialorder %v1117, 8.507059e+37
    %v1119 = vand.u32 %v1053, 2147483648
    %v1120 = vor.u32 1.1754944e-38, %v1119
    %v1121 = vsel %vm1118, %v1120, %v1116
    %v1122 = vrcp.pop %v1056
    %v1123 = vmul.f32 %v1056, %v1122
    %v1124 = vsub.f32 1.0, %v1123
    %v1125 = vmul.f32 %v1122, %v1124
    %v1126 = vadd.f32 %v1122, %v1125
    %vm1127 = vweird.f32 %v1056
    %vm1128 = vweird.f32 %v1122
    %vm1129 = vmor %vm1127, %vm1128
    %v1130 = vsel %vm1129, %v1122, %v1126
    %v1131 = vand.u32 2147483647, %v1056
    %vm1132 = vcmp.eq.f32.partialorder %v1131, 8.507059e+37
    %v1133 = vand.u32 %v1056, 2147483648
    %v1134 = vor.u32 1.1754944e-38, %v1133
    %v1135 = vsel %vm1132, %v1134, %v1130
    %v1136 = vrcp.pop %v1059
    %v1137 = vmul.f32 %v1059, %v1136
    %v1138 = vsub.f32 1.0, %v1137
    %v1139 = vmul.f32 %v1136, %v1138
    %v1140 = vadd.f32 %v1136, %v1139
    %vm1141 = vweird.f32 %v1059
    %vm1142 = vweird.f32 %v1136
    %vm1143 = vmor %vm1141, %vm1142
    %v1144 = vsel %vm1143, %v1136, %v1140
    %v1145 = vand.u32 2147483647, %v1059
    %vm1146 = vcmp.eq.f32.partialorder %v1145, 8.507059e+37
    %v1147 = vand.u32 %v1059, 2147483648
    %v1148 = vor.u32 1.1754944e-38, %v1147
    %v1149 = vsel %vm1146, %v1148, %v1144
    %v1150 = vrcp.pop %v1062
    %v1151 = vmul.f32 %v1062, %v1150
    %v1152 = vsub.f32 1.0, %v1151
    %v1153 = vmul.f32 %v1150, %v1152
    %v1154 = vadd.f32 %v1150, %v1153
    %vm1155 = vweird.f32 %v1062
    %vm1156 = vweird.f32 %v1150
    %vm1157 = vmor %vm1155, %vm1156
    %v1158 = vsel %vm1157, %v1150, %v1154
    %v1159 = vand.u32 2147483647, %v1062
    %vm1160 = vcmp.eq.f32.partialorder %v1159, 8.507059e+37
    %v1161 = vand.u32 %v1062, 2147483648
    %v1162 = vor.u32 1.1754944e-38, %v1161
    %v1163 = vsel %vm1160, %v1162, %v1158
    %v1164 = vrcp.pop %v1065
    %v1165 = vmul.f32 %v1065, %v1164
    %v1166 = vsub.f32 1.0, %v1165
    %v1167 = vmul.f32 %v1164, %v1166
    %v1168 = vadd.f32 %v1164, %v1167
    %vm1169 = vweird.f32 %v1065
    %vm1170 = vweird.f32 %v1164
    %vm1171 = vmor %vm1169, %vm1170
    %v1172 = vsel %vm1171, %v1164, %v1168
    %v1173 = vand.u32 2147483647, %v1065
    %vm1174 = vcmp.eq.f32.partialorder %v1173, 8.507059e+37
    %v1175 = vand.u32 %v1065, 2147483648
    %v1176 = vor.u32 1.1754944e-38, %v1175
    %v1177 = vsel %vm1174, %v1176, %v1172
    %v1178 = vmul.f32 %v1027, %v1079
    %v1179 = vmul.f32 %v1029, %v1093
    %v1180 = vmul.f32 %v1031, %v1107
    %v1181 = vmul.f32 %v1033, %v1121
    %v1182 = vmul.f32 %v1035, %v1135
    %v1183 = vmul.f32 %v1037, %v1149
    %v1184 = vmul.f32 %v1039, %v1163
    %v1185 = vmul.f32 %v1041, %v1177
    %v1186 = vstv %s106
    %v1187 = vmul.f32 %v1178, %v1186
    %v1188 = vmul.f32 %v1179, %v1186
    %v1189 = vmul.f32 %v1180, %v1186
    %v1190 = vmul.f32 %v1181, %v1186
    %v1191 = vmul.f32 %v1182, %v1186
    %v1192 = vmul.f32 %v1183, %v1186
    %v1193 = vmul.f32 %v1184, %v1186
    %v1194 = vmul.f32 %v1185, %v1186
    %v1195 = vstv %s107
    %v1196 = vadd.f32 %v1187, %v1195
    %v1197 = vadd.f32 %v1188, %v1195
    %v1198 = vadd.f32 %v1189, %v1195
    %v1199 = vadd.f32 %v1190, %v1195
    %v1200 = vadd.f32 %v1191, %v1195
    %v1201 = vadd.f32 %v1192, %v1195
    %v1202 = vadd.f32 %v1193, %v1195
    %v1203 = vadd.f32 %v1194, %v1195
    %v1204 = vmax.f32 %v1196, 0.0
    %v1205 = vmax.f32 %v1197, 0.0
    %v1206 = vmax.f32 %v1198, 0.0
    %v1207 = vmax.f32 %v1199, 0.0
    %v1208 = vmax.f32 %v1200, 0.0
    %v1209 = vmax.f32 %v1201, 0.0
    %v1210 = vmax.f32 %v1202, 0.0
    %v1211 = vmax.f32 %v1203, 0.0
    %v1212 = vmin.f32 %v1204, 15.0
    %v1213 = vmin.f32 %v1205, 15.0
    %v1214 = vmin.f32 %v1206, 15.0
    %v1215 = vmin.f32 %v1207, 15.0
    %v1216 = vmin.f32 %v1208, 15.0
    %v1217 = vmin.f32 %v1209, 15.0
    %v1218 = vmin.f32 %v1210, 15.0
    %v1219 = vmin.f32 %v1211, 15.0
    %v1220 = vround.ne.pseudo %v1212
    %v1221 = vround.ne.pseudo %v1213
    %v1222 = vround.ne.pseudo %v1214
    %v1223 = vround.ne.pseudo %v1215
    %v1224 = vround.ne.pseudo %v1216
    %v1225 = vround.ne.pseudo %v1217
    %v1226 = vround.ne.pseudo %v1218
    %v1227 = vround.ne.pseudo %v1219
    %v1228 = vsub.f32 %v1220, %v1195
    %v1229 = vsub.f32 %v1221, %v1195
    %v1230 = vsub.f32 %v1222, %v1195
    %v1231 = vsub.f32 %v1223, %v1195
    %v1232 = vsub.f32 %v1224, %v1195
    %v1233 = vsub.f32 %v1225, %v1195
    %v1234 = vsub.f32 %v1226, %v1195
    %v1235 = vsub.f32 %v1227, %v1195
    %v1236 = vround.ne.pseudo %v1228
    %v1237 = vround.ne.pseudo %v1229
    %v1238 = vround.ne.pseudo %v1230
    %v1239 = vround.ne.pseudo %v1231
    %v1240 = vround.ne.pseudo %v1232
    %v1241 = vround.ne.pseudo %v1233
    %v1242 = vround.ne.pseudo %v1234
    %v1243 = vround.ne.pseudo %v1235
    %v1244 = vpack.c.bf16 %v1236, %v1236
    %v1245 = vpack.c.bf16 %v1237, %v1237
    %v1246 = vpack.c.bf16 %v1238, %v1238
    %v1247 = vpack.c.bf16 %v1239, %v1239
    %v1248 = vpack.c.bf16 %v1240, %v1240
    %v1249 = vpack.c.bf16 %v1241, %v1241
    %v1250 = vpack.c.bf16 %v1242, %v1242
    %v1251 = vpack.c.bf16 %v1243, %v1243
    %v1252 = vpack.c.bf16 %v769, %v769
    %v1253 = vpack.c.bf16 %v770, %v770
    %v1254 = vpack.c.bf16 %v771, %v771
    %v1255 = vpack.c.bf16 %v772, %v772
    %v1256 = vpack.c.bf16 %v773, %v773
    %v1257 = vpack.c.bf16 %v774, %v774
    %v1258 = vpack.c.bf16 %v775, %v775
    %v1259 = vpack.c.bf16 %v776, %v776
    %v1261 = vunpack.c.l.b16 %v1252
    %v1262 = vpack.c.b16 %v1261, %v1261
    %1263 = vrot.lane.b32.xlu0 %v1262, 64
    %v1264 = vpop.permute.xlu0 %1263
    %v1266 = vsel %vm187, %v1244, 0
    %vm1268 = vcmask 1043456
    %v1270 = vsel %vm1268, %v1264, 0
    %1272 = vmatpush.bf16.msra.mxu0 0
    %1273 = vmatpush.bf16.msra.mxu0 0
    %1274 = vmatpush.bf16.msra.mxu0 0
    %1275 = vmatpush.bf16.msra.mxu0 0
    %1276 = vmatpush.bf16.msra.mxu0 0
    %1277 = vmatpush.bf16.msra.mxu0 0
    %1278 = vmatpush.bf16.msra.mxu0 0
    %1279 = vmatpush.bf16.msra.mxu0 %v1270
    %1280 = vmatmul.bf16.gmra.mxu0 %v1266
    %v1281 = vpop.f32.mrf.mxu0
    %v1282 = vadd.f32 0.0, %v1281
    %v1283 = vpop.f32.mrf.mxu0
    %1284 = vdwg.mxu0
    %v1286 = vunpack.c.l.b16 %v1253
    %v1287 = vpack.c.b16 %v1286, %v1286
    %1288 = vrot.lane.b32.xlu0 %v1287, 64
    %v1289 = vpop.permute.xlu0 %1288
    %v1291 = vsel %vm187, %v1245, 0
    %v1294 = vsel %vm1268, %v1289, 0
    %1296 = vmatpush.bf16.msra.mxu0 0
    %1297 = vmatpush.bf16.msra.mxu0 0
    %1298 = vmatpush.bf16.msra.mxu0 0
    %1299 = vmatpush.bf16.msra.mxu0 0
    %1300 = vmatpush.bf16.msra.mxu0 0
    %1301 = vmatpush.bf16.msra.mxu0 0
    %1302 = vmatpush.bf16.msra.mxu0 0
    %1303 = vmatpush.bf16.msra.mxu0 %v1294
    %1304 = vmatmul.bf16.gmra.mxu0 %v1291
    %v1305 = vpop.f32.mrf.mxu0
    %v1306 = vadd.f32 0.0, %v1305
    %v1307 = vpop.f32.mrf.mxu0
    %1308 = vdwg.mxu0
    %v1310 = vunpack.c.l.b16 %v1254
    %v1311 = vpack.c.b16 %v1310, %v1310
    %1312 = vrot.lane.b32.xlu0 %v1311, 64
    %v1313 = vpop.permute.xlu0 %1312
    %v1315 = vsel %vm187, %v1246, 0
    %v1318 = vsel %vm1268, %v1313, 0
    %1320 = vmatpush.bf16.msra.mxu0 0
    %1321 = vmatpush.bf16.msra.mxu0 0
    %1322 = vmatpush.bf16.msra.mxu0 0
    %1323 = vmatpush.bf16.msra.mxu0 0
    %1324 = vmatpush.bf16.msra.mxu0 0
    %1325 = vmatpush.bf16.msra.mxu0 0
    %1326 = vmatpush.bf16.msra.mxu0 0
    %1327 = vmatpush.bf16.msra.mxu0 %v1318
    %1328 = vmatmul.bf16.gmra.mxu0 %v1315
    %v1329 = vpop.f32.mrf.mxu0
    %v1330 = vadd.f32 0.0, %v1329
    %v1331 = vpop.f32.mrf.mxu0
    %1332 = vdwg.mxu0
    %v1334 = vunpack.c.l.b16 %v1255
    %v1335 = vpack.c.b16 %v1334, %v1334
    %1336 = vrot.lane.b32.xlu0 %v1335, 64
    %v1337 = vpop.permute.xlu0 %1336
    %v1339 = vsel %vm187, %v1247, 0
    %v1342 = vsel %vm1268, %v1337, 0
    %1344 = vmatpush.bf16.msra.mxu0 0
    %1345 = vmatpush.bf16.msra.mxu0 0
    %1346 = vmatpush.bf16.msra.mxu0 0
    %1347 = vmatpush.bf16.msra.mxu0 0
    %1348 = vmatpush.bf16.msra.mxu0 0
    %1349 = vmatpush.bf16.msra.mxu0 0
    %1350 = vmatpush.bf16.msra.mxu0 0
    %1351 = vmatpush.bf16.msra.mxu0 %v1342
    %1352 = vmatmul.bf16.gmra.mxu0 %v1339
    %v1353 = vpop.f32.mrf.mxu0
    %v1354 = vadd.f32 0.0, %v1353
    %v1355 = vpop.f32.mrf.mxu0
    %1356 = vdwg.mxu0
    %v1358 = vunpack.c.l.b16 %v1256
    %v1359 = vpack.c.b16 %v1358, %v1358
    %1360 = vrot.lane.b32.xlu0 %v1359, 64
    %v1361 = vpop.permute.xlu0 %1360
    %v1363 = vsel %vm187, %v1248, 0
    %v1366 = vsel %vm1268, %v1361, 0
    %1368 = vmatpush.bf16.msra.mxu0 0
    %1369 = vmatpush.bf16.msra.mxu0 0
    %1370 = vmatpush.bf16.msra.mxu0 0
    %1371 = vmatpush.bf16.msra.mxu0 0
    %1372 = vmatpush.bf16.msra.mxu0 0
    %1373 = vmatpush.bf16.msra.mxu0 0
    %1374 = vmatpush.bf16.msra.mxu0 0
    %1375 = vmatpush.bf16.msra.mxu0 %v1366
    %1376 = vmatmul.bf16.gmra.mxu0 %v1363
    %v1377 = vpop.f32.mrf.mxu0
    %v1378 = vadd.f32 0.0, %v1377
    %v1379 = vpop.f32.mrf.mxu0
    %1380 = vdwg.mxu0
    %v1382 = vunpack.c.l.b16 %v1257
    %v1383 = vpack.c.b16 %v1382, %v1382
    %1384 = vrot.lane.b32.xlu0 %v1383, 64
    %v1385 = vpop.permute.xlu0 %1384
    %v1387 = vsel %vm187, %v1249, 0
    %v1390 = vsel %vm1268, %v1385, 0
    %1392 = vmatpush.bf16.msra.mxu0 0
    %1393 = vmatpush.bf16.msra.mxu0 0
    %1394 = vmatpush.bf16.msra.mxu0 0
    %1395 = vmatpush.bf16.msra.mxu0 0
    %1396 = vmatpush.bf16.msra.mxu0 0
    %1397 = vmatpush.bf16.msra.mxu0 0
    %1398 = vmatpush.bf16.msra.mxu0 0
    %1399 = vmatpush.bf16.msra.mxu0 %v1390
    %1400 = vmatmul.bf16.gmra.mxu0 %v1387
    %v1401 = vpop.f32.mrf.mxu0
    %v1402 = vadd.f32 0.0, %v1401
    %v1403 = vpop.f32.mrf.mxu0
    %1404 = vdwg.mxu0
    %v1406 = vunpack.c.l.b16 %v1258
    %v1407 = vpack.c.b16 %v1406, %v1406
    %1408 = vrot.lane.b32.xlu0 %v1407, 64
    %v1409 = vpop.permute.xlu0 %1408
    %v1411 = vsel %vm187, %v1250, 0
    %v1414 = vsel %vm1268, %v1409, 0
    %1416 = vmatpush.bf16.msra.mxu0 0
    %1417 = vmatpush.bf16.msra.mxu0 0
    %1418 = vmatpush.bf16.msra.mxu0 0
    %1419 = vmatpush.bf16.msra.mxu0 0
    %1420 = vmatpush.bf16.msra.mxu0 0
    %1421 = vmatpush.bf16.msra.mxu0 0
    %1422 = vmatpush.bf16.msra.mxu0 0
    %1423 = vmatpush.bf16.msra.mxu0 %v1414
    %1424 = vmatmul.bf16.gmra.mxu0 %v1411
    %v1425 = vpop.f32.mrf.mxu0
    %v1426 = vadd.f32 0.0, %v1425
    %v1427 = vpop.f32.mrf.mxu0
    %1428 = vdwg.mxu0
    %v1430 = vunpack.c.l.b16 %v1259
    %v1431 = vpack.c.b16 %v1430, %v1430
    %1432 = vrot.lane.b32.xlu0 %v1431, 64
    %v1433 = vpop.permute.xlu0 %1432
    %v1435 = vsel %vm187, %v1251, 0
    %v1438 = vsel %vm1268, %v1433, 0
    %1440 = vmatpush.bf16.msra.mxu0 0
    %1441 = vmatpush.bf16.msra.mxu0 0
    %1442 = vmatpush.bf16.msra.mxu0 0
    %1443 = vmatpush.bf16.msra.mxu0 0
    %1444 = vmatpush.bf16.msra.mxu0 0
    %1445 = vmatpush.bf16.msra.mxu0 0
    %1446 = vmatpush.bf16.msra.mxu0 0
    %1447 = vmatpush.bf16.msra.mxu0 %v1438
    %1448 = vmatmul.bf16.gmra.mxu0 %v1435
    %v1449 = vpop.f32.mrf.mxu0
    %v1450 = vadd.f32 0.0, %v1449
    %v1451 = vpop.f32.mrf.mxu0
    %1452 = vdwg.mxu0
    %1455 = vrot.lane.b32.xlu0 %v1330, 8
    %v1456 = vpop.permute.xlu0 %1455
    %1457 = vrot.lane.b32.xlu0 %v1354, 8
    %v1458 = vpop.permute.xlu0 %1457
    %1463 = vrot.lane.b32.xlu0 %v1378, 16
    %v1464 = vpop.permute.xlu0 %1463
    %1465 = vrot.lane.b32.xlu0 %v1402, 16
    %v1466 = vpop.permute.xlu0 %1465
    %1471 = vrot.lane.b32.xlu0 %v1426, 24
    %v1472 = vpop.permute.xlu0 %1471
    %1473 = vrot.lane.b32.xlu0 %v1450, 24
    %v1474 = vpop.permute.xlu0 %1473
    %v1477 = vsel %vm187, %v1282, %v1456
    %v1478 = vsel %vm187, %v1306, %v1458
    %vm1479 = vcmask 130048
    %v1480 = vsel %vm1479, %v1477, %v1464
    %v1481 = vsel %vm1479, %v1478, %v1466
    %vm1482 = vcmask 195584
    %v1483 = vsel %vm1482, %v1480, %v1472
    %v1484 = vsel %vm1482, %v1481, %v1474
    %v1485 = vstv %s108
    %v1486 = vmul.f32 %v1483, %v1485
    %v1487 = vmul.f32 %v1484, %v1485
    %v1488 = vstv %s109
    %v1489 = vadd.f32 %v1486, %v1488
    %v1490 = vadd.f32 %v1487, %v1488
    %v1491 = vmax.f32 %v1489, 0.0
    %v1492 = vmax.f32 %v1490, 0.0
    %v1493 = vmin.f32 %v1491, 15.0
    %v1494 = vmin.f32 %v1492, 15.0
    %v1495 = vround.ne.pseudo %v1493
    %v1496 = vround.ne.pseudo %v1494
    %v1497 = vld [vmem:[#allocation9] sm:$0xff]
    %v1498 = vld [vmem:[#allocation9 + $0x8] sm:$0xff]
    %v1499 = vld [vmem:[#allocation9 + $0x10] sm:$0xff]
    %v1500 = vld [vmem:[#allocation9 + $0x18] sm:$0xff]
    %v1502 = vsel %vm133, %v1495, 0
    %v1505 = vsel %vm133, %v1496, 0
    %1507 = vmatpush.msra.mxu0 0.0
    %1508 = vmatpush.msra.mxu0 0.0
    %1509 = vmatpush.msra.mxu0 0.0
    %1510 = vmatpush.msra.mxu0 0.0
    %1511 = vmatpush.msra.mxu0 0.0
    %1512 = vmatpush.msra.mxu0 0.0
    %1513 = vmatpush.msra.mxu0 0.0
    %1514 = vmatpush.msra.mxu0 0.0
    %1515 = vmatpush.msra.mxu0 0.0
    %1516 = vmatpush.msra.mxu0 0.0
    %1517 = vmatpush.msra.mxu0 0.0
    %1518 = vmatpush.msra.mxu0 0.0
    %1519 = vmatpush.msra.mxu0 %v1500
    %1520 = vmatpush.msra.mxu0 %v1499
    %1521 = vmatpush.msra.mxu0 %v1498
    %1522 = vmatpush.msra.mxu0 %v1497
    %1523 = vmatmul.f32.gmra.mxu0 %v1502
    %v1524 = vpop.f32.mrf.mxu0
    %v1525 = vadd.f32 0.0, %v1524
    %1526 = vmatmul.f32.gmra.mxu0 %v1505
    %v1527 = vpop.f32.mrf.mxu0
    %v1528 = vadd.f32 0.0, %v1527
    %1529 = vdwg.mxu0
    %v1530 = vstv %s110
    %v1531 = vmul.f32 %v1525, %v1530
    %v1532 = vmul.f32 %v1528, %v1530
    %v1533 = vld [vmem:[%s5] sm:$0x1]
    %v1535 = vperm.slane %v1533, 0
    %v1537 = vadd.f32 %v1531, %v1535
    %v1538 = vadd.f32 %v1532, %v1535
    %1539 = vst.msk [vmem:[#allocation10] sm:$0xff] %vm133, %v1537
    %1540 = vst.msk [vmem:[#allocation10 + $0x8] sm:$0xff] %vm133, %v1538
    // Predicated region
    $region58: #{tpu_custom_call.1} parent=1 // pred_check
      _
    $region59: #{tpu_custom_call.1} parent=1 // pred_check_branch
      %1542 = sbr.rel (0) target = $region61
    $region60: #{tpu_custom_call.1} parent=1 // pred_region
      %1544 = vsyncadd [#allocation4], 0
      %s1545 = sshll.u32 [#allocation10], 4
      %s1546 = int_to_ptr.vmem [resolvable:$true] %s1545
      %s1547 = sshll.u32 %s10, 4
      %s1548 = int_to_ptr.hbm [resolvable:$true] %s1547
      %1553 = dma.vmem_to_hbm [thread:$0]  %s1546, 256, %s1548, [#allocation4], 128, 128, 8
    $region61: #{tpu_custom_call.1} parent=1 // pred_fallthru
      _
    // Predicated region
    $region62: #{tpu_custom_call.1} parent=1 // pred_check
      _
    $region63: #{tpu_custom_call.1} parent=1 // pred_check_branch
      %1555 = sbr.rel (0) target = $region65
    $region64: #{tpu_custom_call.1} parent=1 // pred_region
      %1557 = dma.done [#allocation4], 256
    $region65: #{tpu_custom_call.1} parent=1 // pred_fallthru
      _
    %1558 = vsyncpa [#allocation3], 1
    %1559 = vsyncpa [#allocation8], 1
    %1560 = vsyncpa [#allocation4], 1
    %1561 = vsyncpa [#allocation5], 1

</llo_original>
